<compile_context>
chip_gen: v7x
topology: tpu7x:2x2x1
jax: 0.10.0
libtpu: 0.0.40
codegen_flags: <defaults>
</compile_context>

<pallas_src>
import functools

import jax
import jax.numpy as jnp
from jax.experimental import pallas as pl
from jax.experimental.pallas import tpu as pltpu

_MAX_TILE = 2048   # pixels per grid step on the lane axis (multiple of 128)
_PAD_ROWS = 8      # small-Cout weights are zero-padded to 8 rows for the MXU


def _round_up(x, m):
    return ((x + m - 1) // m) * m


def _pick_tile(hw):
    # Whole image in one tile when small; otherwise a large fixed tile.
    if hw <= _MAX_TILE:
        return _round_up(hw, 128)
    return _MAX_TILE


# ---------------------------------------------------------------------------
# Fused kernel: one (sample, pixel-tile) step of the whole LossG forward.
# ---------------------------------------------------------------------------
def _lossg_kernel(x_ref, y_ref,
                  gw1_ref, gb1_ref, gw2_ref, gb2_ref,
                  dw1_ref, db1_ref, dw2_ref, db2_ref,
                  vw1_ref, vb1_ref,
                  sse_c_ref, sse_f_ref, dsum_ref,
                  acc_c, acc_f, acc_d,
                  *, hw, tile):
    t = pl.program_id(1)

    # Reset per-sample accumulators on the first pixel tile of each sample.
    @pl.when(t == 0)
    def _():
        acc_c[...] = jnp.zeros_like(acc_c)
        acc_f[...] = jnp.zeros_like(acc_f)
        acc_d[...] = jnp.zeros_like(acc_d)

    # (3, tile) pixel slabs; upcast so elementwise math stays f32 (v5e-safe).
    x = x_ref[...].astype(jnp.float32)   # lr pixels
    y = y_ref[...].astype(jnp.float32)   # hr pixels

    gw1, gb1 = gw1_ref[...], gb1_ref[...]
    dw1, db1 = dw1_ref[...], db1_ref[...]
    vw1, vb1 = vw1_ref[...], vb1_ref[...]

    def conv_k3(wt, b, r0, r1, r2):
        # Cin=3 "1x1 conv" as three unrolled VPU broadcast-FMAs; a K=3 MXU
        # contraction would leave the systolic array ~97% empty.
        return wt[:, 0:1] * r0 + wt[:, 1:2] * r1 + wt[:, 2:3] * r2 + b

    # --- generator: fake = tanh(W2 @ relu(W1 @ lr + b1) + b2) ---------------
    h1 = jnp.maximum(conv_k3(gw1, gb1, x[0:1], x[1:2], x[2:3]), 0.0)  # (32,T)
    fake = jnp.tanh(
        jnp.dot(gw2_ref[...], h1, preferred_element_type=jnp.float32)
        + gb2_ref[...])                                # (8,T); rows 3..7 == 0
    f0, f1, f2 = fake[0:1], fake[1:2], fake[2:3]

    # --- discriminator logits on fake (pooled per sample, never hits HBM) ---
    h2 = jnp.maximum(conv_k3(dw1, db1, f0, f1, f2), 0.0)              # (32,T)
    logit = (jnp.dot(dw2_ref[...], h2, preferred_element_type=jnp.float32)
             + db2_ref[...])                           # (8,T); rows 1..7 == 0

    # --- vgg features of (fake+1)/2 and (hr+1)/2 (rescale fused) ------------
    ff = jnp.maximum(
        conv_k3(vw1, vb1, f0 * 0.5 + 0.5, f1 * 0.5 + 0.5, f2 * 0.5 + 0.5), 0.0)
    rf = jnp.maximum(
        conv_k3(vw1, vb1, y[0:1] * 0.5 + 0.5, y[1:2] * 0.5 + 0.5,
                y[2:3] * 0.5 + 0.5), 0.0)                             # (16,T)

    # --- masked accumulation (mask only materialized for ragged tails) ------
    if hw % tile != 0:
        col = jax.lax.broadcasted_iota(jnp.int32, (1, tile), 1) + t * tile
        valid = (col < hw).astype(jnp.float32)
    else:
        valid = None

    def _mask(v):
        return v if valid is None else v * valid

    d_c = fake[0:3] - y
    d_f = ff - rf
    acc_c[...] += _mask(d_c * d_c)   # content SSE partials     (3,  tile)
    acc_f[...] += _mask(d_f * d_f)   # perceptual SSE partials  (16, tile)
    acc_d[...] += _mask(logit)       # D-logit partial sums     (8,  tile)

    # --- collapse once per sample; write a full lane-dense (8,128) block ----
    @pl.when(t == pl.num_programs(1) - 1)
    def _():
        sse_c_ref[...] = jnp.full((8, 128), jnp.sum(acc_c[...]), jnp.float32)
        sse_f_ref[...] = jnp.full((8, 128), jnp.sum(acc_f[...]), jnp.float32)
        dsum_ref[...] = jnp.full((8, 128), jnp.sum(acc_d[...]), jnp.float32)


def _fused_lossg(x, y, params, *, tile, hw):
    """x, y: (N, 3, HW_pad) slabs.  Returns per-sample content-SSE,
    feature-SSE and D-logit sums, each broadcast into an (N, 8, 128) block."""
    n, c, hw_pad = x.shape
    grid = (n, hw_pad // tile)

    weights = (params["g_w1"], params["g_b1"], params["g_w2p"], params["g_b2p"],
               params["d_w1"], params["d_b1"], params["d_w2p"], params["d_b2p"],
               params["v_w1"], params["v_b1"])

    slab_spec = pl.BlockSpec((None, c, tile), lambda i, j: (i, 0, j))
    weight_specs = [pl.BlockSpec(w.shape, lambda i, j: (0, 0)) for w in weights]
    out_spec = pl.BlockSpec((None, 8, 128), lambda i, j: (i, 0, 0))
    out_shape = jax.ShapeDtypeStruct((n, 8, 128), jnp.float32)

    kernel = functools.partial(_lossg_kernel, hw=hw, tile=tile)
    return pl.pallas_call(
        kernel,
        out_shape=(out_shape, out_shape, out_shape),
        grid=grid,
        in_specs=[slab_spec, slab_spec] + weight_specs,
        out_specs=(out_spec, out_spec, out_spec),
        scratch_shapes=[
            pltpu.VMEM((3, tile), jnp.float32),    # content SSE partials
            pltpu.VMEM((16, tile), jnp.float32),   # perceptual SSE partials
            pltpu.VMEM((8, tile), jnp.float32),    # D-logit partial sums
        ],
        compiler_params=pltpu.CompilerParams(
            # Sample axis is parallel (each sample owns its output blocks, so
            # this is race-free and lets v7x's 2 TensorCores split the work);
            # the pixel-tile axis carries the accumulators -> arbitrary.
            dimension_semantics=("parallel", "arbitrary"),
            vmem_limit_bytes=32 * 1024 * 1024,     # safe on v7x (64 MiB VMEM)
        ),
    )(x, y, *weights)


# ---------------------------------------------------------------------------
# Synthetic sub-network parameters (deterministic), (Cout, Cin) layout.
# ---------------------------------------------------------------------------
def init_params(key):
    ks = jax.random.split(key, 5)

    def w(k, cout, cin):
        return jax.random.normal(k, (cout, cin), jnp.float32) * 0.1

    def pad_rows(a):  # zero-pad tiny Cout to 8 rows for aligned MXU matmuls
        return jnp.pad(a, ((0, _PAD_ROWS - a.shape[0]), (0, 0)))

    return {
        # net_G: 1x1 conv (3->32) + ReLU, 1x1 conv (32->3) + tanh
        "g_w1": w(ks[0], 32, 3), "g_b1": jnp.zeros((32, 1), jnp.float32),
        "g_w2p": pad_rows(w(ks[1], 3, 32)),
        "g_b2p": jnp.zeros((_PAD_ROWS, 1), jnp.float32),
        # net_D: 1x1 conv (3->32) + ReLU, 1x1 conv (32->1), global avg pool
        "d_w1": w(ks[2], 32, 3), "d_b1": jnp.zeros((32, 1), jnp.float32),
        "d_w2p": pad_rows(w(ks[3], 1, 32)),
        "d_b2p": jnp.zeros((_PAD_ROWS, 1), jnp.float32),
        # vgg feature extractor: 1x1 conv (3->16) + ReLU
        "v_w1": w(ks[4], 16, 3), "v_b1": jnp.zeros((16, 1), jnp.float32),
    }


# ---------------------------------------------------------------------------
# LossG forward
# ---------------------------------------------------------------------------
def loss_g(params, lr, hr):
    n, c, h, w = lr.shape
    assert c == 3, "synthetic sub-networks assume 3 input channels"
    hw = h * w
    tile = _pick_tile(hw)
    hw_pad = _round_up(hw, tile)

    # NCHW -> (N, C, H*W): free reshape (no transpose); lane axis = pixels.
    x = lr.reshape(n, c, hw)
    y = hr.reshape(n, c, hw)
    if hw_pad != hw:  # padded pixels are masked out inside the kernel
        pad = ((0, 0), (0, 0), (0, hw_pad - hw))
        x = jnp.pad(x, pad)
        y = jnp.pad(y, pad)

    sse_c, sse_f, dsum = _fused_lossg(x, y, params, tile=tile, hw=hw)
    sse_c = sse_c[:, 0, 0]          # (N,) per-sample content SSE
    sse_f = sse_f[:, 0, 0]          # (N,) per-sample feature SSE
    d_score = dsum[:, 0, 0] / hw    # (N,) per-sample pooled D score

    npix = n * hw
    # loss_1 = 0.001 * f1(d(fake), ones)   (f1 = MSE-to-one, LSGAN style)
    loss_1 = 0.001 * jnp.mean((d_score - 1.0) ** 2)
    # loss_2 = f2(fake, hr)                (f2 = MSE)
    loss_2 = jnp.sum(sse_c) / (npix * 3)
    # loss_3 = 2e-6 * f2(vgg((fake+1)/2), vgg((hr+1)/2))
    loss_3 = 2e-6 * (jnp.sum(sse_f) / (npix * 16))
    return loss_1 + loss_2 + loss_3


# Pure-JAX reference of the same synthetic LossG (correctness check only).
def _loss_g_ref(params, lr, hr):
    n, c, h, w = lr.shape
    x = lr.reshape(n, c, h * w).astype(jnp.float32)
    y = hr.reshape(n, c, h * w).astype(jnp.float32)

    def conv(wt, b, v):  # wt (Cout,Cin), b (Cout,1), v (N,Cin,P)
        return jnp.einsum("oi,nip->nop", wt, v) + b[None]

    h1 = jax.nn.relu(conv(params["g_w1"], params["g_b1"], x))
    fake = jnp.tanh(conv(params["g_w2p"][:3], params["g_b2p"][:3], h1))
    h2 = jax.nn.relu(conv(params["d_w1"], params["d_b1"], fake))
    score = jnp.mean(conv(params["d_w2p"][:1], params["d_b2p"][:1], h2),
                     axis=(1, 2))
    ff = jax.nn.relu(conv(params["v_w1"], params["v_b1"], (fake + 1.0) / 2.0))
    rf = jax.nn.relu(conv(params["v_w1"], params["v_b1"], (y + 1.0) / 2.0))
    return (0.001 * jnp.mean((score - 1.0) ** 2)
            + jnp.mean((fake - y) ** 2)
            + 2e-6 * jnp.mean((ff - rf) ** 2))


if __name__ == "__main__":
    key = jax.random.PRNGKey(0)
    k_p, k_lr, k_hr = jax.random.split(key, 3)

    params = init_params(k_p)
    lr = jax.random.uniform(k_lr, (2, 3, 16, 16), jnp.float32, -1.0, 1.0)
    hr = jax.random.uniform(k_hr, (2, 3, 16, 16), jnp.float32, -1.0, 1.0)

    loss = jax.jit(loss_g)(params, lr, hr)
    jax.block_until_ready(loss)

    ref = _loss_g_ref(params, lr, hr)
    assert loss.shape == () and bool(jnp.isfinite(loss))
    assert bool(jnp.allclose(loss, ref, rtol=5e-2, atol=1e-4)), (loss, ref)
    print("KERNEL_OK")
</pallas_src>

<mosaic_0001>
module attributes {stable_mosaic.version = 11 : i64} {
  func.func @_lossg_kernel(%arg0: i32, %arg1: i32, %arg2: memref<1x3x256xf32, #tpu.memory_space<vmem>>, %arg3: memref<1x3x256xf32, #tpu.memory_space<vmem>>, %arg4: memref<32x3xf32, #tpu.memory_space<vmem>>, %arg5: memref<32x1xf32, #tpu.memory_space<vmem>>, %arg6: memref<8x32xf32, #tpu.memory_space<vmem>>, %arg7: memref<8x1xf32, #tpu.memory_space<vmem>>, %arg8: memref<32x3xf32, #tpu.memory_space<vmem>>, %arg9: memref<32x1xf32, #tpu.memory_space<vmem>>, %arg10: memref<8x32xf32, #tpu.memory_space<vmem>>, %arg11: memref<8x1xf32, #tpu.memory_space<vmem>>, %arg12: memref<16x3xf32, #tpu.memory_space<vmem>>, %arg13: memref<16x1xf32, #tpu.memory_space<vmem>>, %arg14: memref<1x8x128xf32, #tpu.memory_space<vmem>>, %arg15: memref<1x8x128xf32, #tpu.memory_space<vmem>>, %arg16: memref<1x8x128xf32, #tpu.memory_space<vmem>>, %arg17: memref<3x256xf32, #tpu.memory_space<vmem>>, %arg18: memref<16x256xf32, #tpu.memory_space<vmem>>, %arg19: memref<8x256xf32, #tpu.memory_space<vmem>>) attributes {dimension_semantics = [#tpu.dimension_semantics<parallel>, #tpu.dimension_semantics<arbitrary>], iteration_bounds = array<i64: 2, 1>, scalar_prefetch = 0 : i64, scratch_operands = 3 : i64, tpu.core_type = #tpu.core_type<tc>, window_params = [{transform_indices = @transform_0, window_bounds = array<i64: 1, 3, 256>}, {transform_indices = @transform_1, window_bounds = array<i64: 1, 3, 256>}, {pipeline_mode = #tpu.pipeline_mode<synchronous>, transform_indices = @transform_2, window_bounds = array<i64: 32, 3>}, {pipeline_mode = #tpu.pipeline_mode<synchronous>, transform_indices = @transform_3, window_bounds = array<i64: 32, 1>}, {pipeline_mode = #tpu.pipeline_mode<synchronous>, transform_indices = @transform_4, window_bounds = array<i64: 8, 32>}, {pipeline_mode = #tpu.pipeline_mode<synchronous>, transform_indices = @transform_5, window_bounds = array<i64: 8, 1>}, {pipeline_mode = #tpu.pipeline_mode<synchronous>, transform_indices = @transform_6, window_bounds = array<i64: 32, 3>}, {pipeline_mode = #tpu.pipeline_mode<synchronous>, transform_indices = @transform_7, window_bounds = array<i64: 32, 1>}, {pipeline_mode = #tpu.pipeline_mode<synchronous>, transform_indices = @transform_8, window_bounds = array<i64: 8, 32>}, {pipeline_mode = #tpu.pipeline_mode<synchronous>, transform_indices = @transform_9, window_bounds = array<i64: 8, 1>}, {pipeline_mode = #tpu.pipeline_mode<synchronous>, transform_indices = @transform_10, window_bounds = array<i64: 16, 3>}, {pipeline_mode = #tpu.pipeline_mode<synchronous>, transform_indices = @transform_11, window_bounds = array<i64: 16, 1>}, {transform_indices = @transform_12, window_bounds = array<i64: 1, 8, 128>}, {transform_indices = @transform_13, window_bounds = array<i64: 1, 8, 128>}, {transform_indices = @transform_14, window_bounds = array<i64: 1, 8, 128>}]} {
    %c0_i32 = arith.constant 0 : i32
    %0 = arith.cmpi eq, %arg1, %c0_i32 : i32
    %1 = arith.extui %0 : i1 to i32
    %c0_i32_0 = arith.constant 0 : i32
    %2 = arith.cmpi ne, %1, %c0_i32_0 : i32
    scf.if %2 {
      %cst_57 = arith.constant 0.000000e+00 : f32
      %146 = vector.broadcast %cst_57 : f32 to vector<3x256xf32>
      %c0_58 = arith.constant 0 : index
      %c0_59 = arith.constant 0 : index
      %147 = vector.load %arg17[%c0_58, %c0_59] : memref<3x256xf32, #tpu.memory_space<vmem>>, vector<3x256xf32>
      tpu.vector_store %arg17[%c0_58, %c0_59], %146 {strides = array<i32>} : memref<3x256xf32, #tpu.memory_space<vmem>>, vector<3x256xf32>,
      %cst_60 = arith.constant 0.000000e+00 : f32
      %148 = vector.broadcast %cst_60 : f32 to vector<16x256xf32>
      %c0_61 = arith.constant 0 : index
      %c0_62 = arith.constant 0 : index
      %149 = vector.load %arg18[%c0_61, %c0_62] : memref<16x256xf32, #tpu.memory_space<vmem>>, vector<16x256xf32>
      tpu.vector_store %arg18[%c0_61, %c0_62], %148 {strides = array<i32>} : memref<16x256xf32, #tpu.memory_space<vmem>>, vector<16x256xf32>,
      %cst_63 = arith.constant 0.000000e+00 : f32
      %150 = vector.broadcast %cst_63 : f32 to vector<8x256xf32>
      %c0_64 = arith.constant 0 : index
      %c0_65 = arith.constant 0 : index
      %151 = vector.load %arg19[%c0_64, %c0_65] : memref<8x256xf32, #tpu.memory_space<vmem>>, vector<8x256xf32>
      tpu.vector_store %arg19[%c0_64, %c0_65], %150 {strides = array<i32>} : memref<8x256xf32, #tpu.memory_space<vmem>>, vector<8x256xf32>,
    } else {
    }
    %c0 = arith.constant 0 : index
    %c0_1 = arith.constant 0 : index
    %c0_2 = arith.constant 0 : index
    %3 = vector.load %arg2[%c0, %c0_1, %c0_2] : memref<1x3x256xf32, #tpu.memory_space<vmem>>, vector<1x3x256xf32>
    %4 = vector.shape_cast %3 : vector<1x3x256xf32> to vector<3x256xf32>
    %c0_3 = arith.constant 0 : index
    %c0_4 = arith.constant 0 : index
    %c0_5 = arith.constant 0 : index
    %5 = vector.load %arg3[%c0_3, %c0_4, %c0_5] : memref<1x3x256xf32, #tpu.memory_space<vmem>>, vector<1x3x256xf32>
    %6 = vector.shape_cast %5 : vector<1x3x256xf32> to vector<3x256xf32>
    %c0_6 = arith.constant 0 : index
    %c0_7 = arith.constant 0 : index
    %7 = vector.load %arg4[%c0_6, %c0_7] : memref<32x3xf32, #tpu.memory_space<vmem>>, vector<32x3xf32>
    %c0_8 = arith.constant 0 : index
    %c0_9 = arith.constant 0 : index
    %8 = vector.load %arg5[%c0_8, %c0_9] : memref<32x1xf32, #tpu.memory_space<vmem>>, vector<32x1xf32>
    %c0_10 = arith.constant 0 : index
    %c0_11 = arith.constant 0 : index
    %9 = vector.load %arg8[%c0_10, %c0_11] : memref<32x3xf32, #tpu.memory_space<vmem>>, vector<32x3xf32>
    %c0_12 = arith.constant 0 : index
    %c0_13 = arith.constant 0 : index
    %10 = vector.load %arg9[%c0_12, %c0_13] : memref<32x1xf32, #tpu.memory_space<vmem>>, vector<32x1xf32>
    %c0_14 = arith.constant 0 : index
    %c0_15 = arith.constant 0 : index
    %11 = vector.load %arg12[%c0_14, %c0_15] : memref<16x3xf32, #tpu.memory_space<vmem>>, vector<16x3xf32>
    %c0_16 = arith.constant 0 : index
    %c0_17 = arith.constant 0 : index
    %12 = vector.load %arg13[%c0_16, %c0_17] : memref<16x1xf32, #tpu.memory_space<vmem>>, vector<16x1xf32>
    %13 = vector.extract_strided_slice %4 {offsets = [0, 0], sizes = [1, 256], strides = [1, 1]} : vector<3x256xf32> to vector<1x256xf32>
    %14 = vector.extract_strided_slice %4 {offsets = [1, 0], sizes = [1, 256], strides = [1, 1]} : vector<3x256xf32> to vector<1x256xf32>
    %15 = vector.extract_strided_slice %4 {offsets = [2, 0], sizes = [1, 256], strides = [1, 1]} : vector<3x256xf32> to vector<1x256xf32>
    %16 = vector.extract_strided_slice %7 {offsets = [0, 0], sizes = [32, 1], strides = [1, 1]} : vector<32x3xf32> to vector<32x1xf32>
    %17 = vector.broadcast %16 : vector<32x1xf32> to vector<32x256xf32>
    %18 = vector.broadcast %13 : vector<1x256xf32> to vector<32x256xf32>
    %19 = arith.mulf %17, %18 : vector<32x256xf32>
    %20 = vector.extract_strided_slice %7 {offsets = [0, 1], sizes = [32, 1], strides = [1, 1]} : vector<32x3xf32> to vector<32x1xf32>
    %21 = vector.broadcast %20 : vector<32x1xf32> to vector<32x256xf32>
    %22 = vector.broadcast %14 : vector<1x256xf32> to vector<32x256xf32>
    %23 = arith.mulf %21, %22 : vector<32x256xf32>
    %24 = arith.addf %19, %23 : vector<32x256xf32>
    %25 = vector.extract_strided_slice %7 {offsets = [0, 2], sizes = [32, 1], strides = [1, 1]} : vector<32x3xf32> to vector<32x1xf32>
    %26 = vector.broadcast %25 : vector<32x1xf32> to vector<32x256xf32>
    %27 = vector.broadcast %15 : vector<1x256xf32> to vector<32x256xf32>
    %28 = arith.mulf %26, %27 : vector<32x256xf32>
    %29 = arith.addf %24, %28 : vector<32x256xf32>
    %30 = vector.broadcast %8 : vector<32x1xf32> to vector<32x256xf32>
    %31 = arith.addf %29, %30 : vector<32x256xf32>
    %cst = arith.constant 0.000000e+00 : f32
    %32 = vector.broadcast %cst : f32 to vector<32x256xf32>
    %33 = arith.maximumf %31, %32 : vector<32x256xf32>
    %c0_18 = arith.constant 0 : index
    %c0_19 = arith.constant 0 : index
    %34 = vector.load %arg6[%c0_18, %c0_19] : memref<8x32xf32, #tpu.memory_space<vmem>>, vector<8x32xf32>
    %cst_20 = arith.constant dense<0.000000e+00> : vector<8x256xf32>
    %35 = tpu.matmul %34, %33, %cst_20 {dimension_numbers = #tpu.dot_dimension_numbers<[1], [0], [0], [1], [0, 0, 1, 1], [], []>} : vector<8x32xf32>, vector<32x256xf32>, vector<8x256xf32> -> vector<8x256xf32>
    %c0_21 = arith.constant 0 : index
    %c0_22 = arith.constant 0 : index
    %36 = vector.load %arg7[%c0_21, %c0_22] : memref<8x1xf32, #tpu.memory_space<vmem>>, vector<8x1xf32>
    %37 = vector.broadcast %36 : vector<8x1xf32> to vector<8x256xf32>
    %38 = arith.addf %35, %37 : vector<8x256xf32>
    %39 = math.tanh %38 : vector<8x256xf32>
    %40 = vector.extract_strided_slice %39 {offsets = [0, 0], sizes = [1, 256], strides = [1, 1]} : vector<8x256xf32> to vector<1x256xf32>
    %41 = vector.extract_strided_slice %39 {offsets = [1, 0], sizes = [1, 256], strides = [1, 1]} : vector<8x256xf32> to vector<1x256xf32>
    %42 = vector.extract_strided_slice %39 {offsets = [2, 0], sizes = [1, 256], strides = [1, 1]} : vector<8x256xf32> to vector<1x256xf32>
    %43 = vector.extract_strided_slice %9 {offsets = [0, 0], sizes = [32, 1], strides = [1, 1]} : vector<32x3xf32> to vector<32x1xf32>
    %44 = vector.broadcast %43 : vector<32x1xf32> to vector<32x256xf32>
    %45 = vector.broadcast %40 : vector<1x256xf32> to vector<32x256xf32>
    %46 = arith.mulf %44, %45 : vector<32x256xf32>
    %47 = vector.extract_strided_slice %9 {offsets = [0, 1], sizes = [32, 1], strides = [1, 1]} : vector<32x3xf32> to vector<32x1xf32>
    %48 = vector.broadcast %47 : vector<32x1xf32> to vector<32x256xf32>
    %49 = vector.broadcast %41 : vector<1x256xf32> to vector<32x256xf32>
    %50 = arith.mulf %48, %49 : vector<32x256xf32>
    %51 = arith.addf %46, %50 : vector<32x256xf32>
    %52 = vector.extract_strided_slice %9 {offsets = [0, 2], sizes = [32, 1], strides = [1, 1]} : vector<32x3xf32> to vector<32x1xf32>
    %53 = vector.broadcast %52 : vector<32x1xf32> to vector<32x256xf32>
    %54 = vector.broadcast %42 : vector<1x256xf32> to vector<32x256xf32>
    %55 = arith.mulf %53, %54 : vector<32x256xf32>
    %56 = arith.addf %51, %55 : vector<32x256xf32>
    %57 = vector.broadcast %10 : vector<32x1xf32> to vector<32x256xf32>
    %58 = arith.addf %56, %57 : vector<32x256xf32>
    %cst_23 = arith.constant 0.000000e+00 : f32
    %59 = vector.broadcast %cst_23 : f32 to vector<32x256xf32>
    %60 = arith.maximumf %58, %59 : vector<32x256xf32>
    %c0_24 = arith.constant 0 : index
    %c0_25 = arith.constant 0 : index
    %61 = vector.load %arg10[%c0_24, %c0_25] : memref<8x32xf32, #tpu.memory_space<vmem>>, vector<8x32xf32>
    %cst_26 = arith.constant dense<0.000000e+00> : vector<8x256xf32>
    %62 = tpu.matmul %61, %60, %cst_26 {dimension_numbers = #tpu.dot_dimension_numbers<[1], [0], [0], [1], [0, 0, 1, 1], [], []>} : vector<8x32xf32>, vector<32x256xf32>, vector<8x256xf32> -> vector<8x256xf32>
    %c0_27 = arith.constant 0 : index
    %c0_28 = arith.constant 0 : index
    %63 = vector.load %arg11[%c0_27, %c0_28] : memref<8x1xf32, #tpu.memory_space<vmem>>, vector<8x1xf32>
    %64 = vector.broadcast %63 : vector<8x1xf32> to vector<8x256xf32>
    %65 = arith.addf %62, %64 : vector<8x256xf32>
    %cst_29 = arith.constant 5.000000e-01 : f32
    %66 = vector.broadcast %cst_29 : f32 to vector<1x256xf32>
    %67 = arith.mulf %40, %66 : vector<1x256xf32>
    %cst_30 = arith.constant 5.000000e-01 : f32
    %68 = vector.broadcast %cst_30 : f32 to vector<1x256xf32>
    %69 = arith.addf %67, %68 : vector<1x256xf32>
    %cst_31 = arith.constant 5.000000e-01 : f32
    %70 = vector.broadcast %cst_31 : f32 to vector<1x256xf32>
    %71 = arith.mulf %41, %70 : vector<1x256xf32>
    %cst_32 = arith.constant 5.000000e-01 : f32
    %72 = vector.broadcast %cst_32 : f32 to vector<1x256xf32>
    %73 = arith.addf %71, %72 : vector<1x256xf32>
    %cst_33 = arith.constant 5.000000e-01 : f32
    %74 = vector.broadcast %cst_33 : f32 to vector<1x256xf32>
    %75 = arith.mulf %42, %74 : vector<1x256xf32>
    %cst_34 = arith.constant 5.000000e-01 : f32
    %76 = vector.broadcast %cst_34 : f32 to vector<1x256xf32>
    %77 = arith.addf %75, %76 : vector<1x256xf32>
    %78 = vector.extract_strided_slice %11 {offsets = [0, 0], sizes = [16, 1], strides = [1, 1]} : vector<16x3xf32> to vector<16x1xf32>
    %79 = vector.broadcast %78 : vector<16x1xf32> to vector<16x256xf32>
    %80 = vector.broadcast %69 : vector<1x256xf32> to vector<16x256xf32>
    %81 = arith.mulf %79, %80 : vector<16x256xf32>
    %82 = vector.extract_strided_slice %11 {offsets = [0, 1], sizes = [16, 1], strides = [1, 1]} : vector<16x3xf32> to vector<16x1xf32>
    %83 = vector.broadcast %82 : vector<16x1xf32> to vector<16x256xf32>
    %84 = vector.broadcast %73 : vector<1x256xf32> to vector<16x256xf32>
    %85 = arith.mulf %83, %84 : vector<16x256xf32>
    %86 = arith.addf %81, %85 : vector<16x256xf32>
    %87 = vector.extract_strided_slice %11 {offsets = [0, 2], sizes = [16, 1], strides = [1, 1]} : vector<16x3xf32> to vector<16x1xf32>
    %88 = vector.broadcast %87 : vector<16x1xf32> to vector<16x256xf32>
    %89 = vector.broadcast %77 : vector<1x256xf32> to vector<16x256xf32>
    %90 = arith.mulf %88, %89 : vector<16x256xf32>
    %91 = arith.addf %86, %90 : vector<16x256xf32>
    %92 = vector.broadcast %12 : vector<16x1xf32> to vector<16x256xf32>
    %93 = arith.addf %91, %92 : vector<16x256xf32>
    %cst_35 = arith.constant 0.000000e+00 : f32
    %94 = vector.broadcast %cst_35 : f32 to vector<16x256xf32>
    %95 = arith.maximumf %93, %94 : vector<16x256xf32>
    %96 = vector.extract_strided_slice %6 {offsets = [0, 0], sizes = [1, 256], strides = [1, 1]} : vector<3x256xf32> to vector<1x256xf32>
    %cst_36 = arith.constant 5.000000e-01 : f32
    %97 = vector.broadcast %cst_36 : f32 to vector<1x256xf32>
    %98 = arith.mulf %96, %97 : vector<1x256xf32>
    %cst_37 = arith.constant 5.000000e-01 : f32
    %99 = vector.broadcast %cst_37 : f32 to vector<1x256xf32>
    %100 = arith.addf %98, %99 : vector<1x256xf32>
    %101 = vector.extract_strided_slice %6 {offsets = [1, 0], sizes = [1, 256], strides = [1, 1]} : vector<3x256xf32> to vector<1x256xf32>
    %cst_38 = arith.constant 5.000000e-01 : f32
    %102 = vector.broadcast %cst_38 : f32 to vector<1x256xf32>
    %103 = arith.mulf %101, %102 : vector<1x256xf32>
    %cst_39 = arith.constant 5.000000e-01 : f32
    %104 = vector.broadcast %cst_39 : f32 to vector<1x256xf32>
    %105 = arith.addf %103, %104 : vector<1x256xf32>
    %106 = vector.extract_strided_slice %6 {offsets = [2, 0], sizes = [1, 256], strides = [1, 1]} : vector<3x256xf32> to vector<1x256xf32>
    %cst_40 = arith.constant 5.000000e-01 : f32
    %107 = vector.broadcast %cst_40 : f32 to vector<1x256xf32>
    %108 = arith.mulf %106, %107 : vector<1x256xf32>
    %cst_41 = arith.constant 5.000000e-01 : f32
    %109 = vector.broadcast %cst_41 : f32 to vector<1x256xf32>
    %110 = arith.addf %108, %109 : vector<1x256xf32>
    %111 = vector.extract_strided_slice %11 {offsets = [0, 0], sizes = [16, 1], strides = [1, 1]} : vector<16x3xf32> to vector<16x1xf32>
    %112 = vector.broadcast %111 : vector<16x1xf32> to vector<16x256xf32>
    %113 = vector.broadcast %100 : vector<1x256xf32> to vector<16x256xf32>
    %114 = arith.mulf %112, %113 : vector<16x256xf32>
    %115 = vector.extract_strided_slice %11 {offsets = [0, 1], sizes = [16, 1], strides = [1, 1]} : vector<16x3xf32> to vector<16x1xf32>
    %116 = vector.broadcast %115 : vector<16x1xf32> to vector<16x256xf32>
    %117 = vector.broadcast %105 : vector<1x256xf32> to vector<16x256xf32>
    %118 = arith.mulf %116, %117 : vector<16x256xf32>
    %119 = arith.addf %114, %118 : vector<16x256xf32>
    %120 = vector.extract_strided_slice %11 {offsets = [0, 2], sizes = [16, 1], strides = [1, 1]} : vector<16x3xf32> to vector<16x1xf32>
    %121 = vector.broadcast %120 : vector<16x1xf32> to vector<16x256xf32>
    %122 = vector.broadcast %110 : vector<1x256xf32> to vector<16x256xf32>
    %123 = arith.mulf %121, %122 : vector<16x256xf32>
    %124 = arith.addf %119, %123 : vector<16x256xf32>
    %125 = vector.broadcast %12 : vector<16x1xf32> to vector<16x256xf32>
    %126 = arith.addf %124, %125 : vector<16x256xf32>
    %cst_42 = arith.constant 0.000000e+00 : f32
    %127 = vector.broadcast %cst_42 : f32 to vector<16x256xf32>
    %128 = arith.maximumf %126, %127 : vector<16x256xf32>
    %129 = vector.extract_strided_slice %39 {offsets = [0, 0], sizes = [3, 256], strides = [1, 1]} : vector<8x256xf32> to vector<3x256xf32>
    %130 = arith.subf %129, %6 : vector<3x256xf32>
    %131 = arith.subf %95, %128 : vector<16x256xf32>
    %c0_43 = arith.constant 0 : index
    %c0_44 = arith.constant 0 : index
    %132 = vector.load %arg17[%c0_43, %c0_44] : memref<3x256xf32, #tpu.memory_space<vmem>>, vector<3x256xf32>
    %133 = arith.mulf %130, %130 : vector<3x256xf32>
    %134 = arith.addf %132, %133 : vector<3x256xf32>
    %c0_45 = arith.constant 0 : index
    %c0_46 = arith.constant 0 : index
    %135 = vector.load %arg17[%c0_45, %c0_46] : memref<3x256xf32, #tpu.memory_space<vmem>>, vector<3x256xf32>
    tpu.vector_store %arg17[%c0_45, %c0_46], %134 {strides = array<i32>} : memref<3x256xf32, #tpu.memory_space<vmem>>, vector<3x256xf32>,
    %c0_47 = arith.constant 0 : index
    %c0_48 = arith.constant 0 : index
    %136 = vector.load %arg18[%c0_47, %c0_48] : memref<16x256xf32, #tpu.memory_space<vmem>>, vector<16x256xf32>
    %137 = arith.mulf %131, %131 : vector<16x256xf32>
    %138 = arith.addf %136, %137 : vector<16x256xf32>
    %c0_49 = arith.constant 0 : index
    %c0_50 = arith.constant 0 : index
    %139 = vector.load %arg18[%c0_49, %c0_50] : memref<16x256xf32, #tpu.memory_space<vmem>>, vector<16x256xf32>
    tpu.vector_store %arg18[%c0_49, %c0_50], %138 {strides = array<i32>} : memref<16x256xf32, #tpu.memory_space<vmem>>, vector<16x256xf32>,
    %c0_51 = arith.constant 0 : index
    %c0_52 = arith.constant 0 : index
    %140 = vector.load %arg19[%c0_51, %c0_52] : memref<8x256xf32, #tpu.memory_space<vmem>>, vector<8x256xf32>
    %141 = arith.addf %140, %65 : vector<8x256xf32>
    %c0_53 = arith.constant 0 : index
    %c0_54 = arith.constant 0 : index
    %142 = vector.load %arg19[%c0_53, %c0_54] : memref<8x256xf32, #tpu.memory_space<vmem>>, vector<8x256xf32>
    tpu.vector_store %arg19[%c0_53, %c0_54], %141 {strides = array<i32>} : memref<8x256xf32, #tpu.memory_space<vmem>>, vector<8x256xf32>,
    %c0_i32_55 = arith.constant 0 : i32
    %143 = arith.cmpi eq, %arg1, %c0_i32_55 : i32
    %144 = arith.extui %143 : i1 to i32
    %c0_i32_56 = arith.constant 0 : i32
    %145 = arith.cmpi ne, %144, %c0_i32_56 : i32
    scf.if %145 {
      %c0_57 = arith.constant 0 : index
      %c0_58 = arith.constant 0 : index
      %146 = vector.load %arg17[%c0_57, %c0_58] : memref<3x256xf32, #tpu.memory_space<vmem>>, vector<3x256xf32>
      %147 = vector.shape_cast %146 : vector<3x256xf32> to vector<1x3x256xf32>
      %cst_59 = arith.constant dense<0.000000e+00> : vector<1xf32>
      %148 = vector.multi_reduction <add>, %147, %cst_59 [1, 2] : vector<1x3x256xf32> to vector<1xf32>
      %149 = vector.shape_cast %148 : vector<1xf32> to vector<1x1x1xf32>
      %150 = vector.extract %149[0, 0, 0] : f32 from vector<1x1x1xf32>
      %151 = vector.broadcast %150 : f32 to vector<8x128xf32>
      %c0_60 = arith.constant 0 : index
      %c0_61 = arith.constant 0 : index
      %c0_62 = arith.constant 0 : index
      %152 = vector.load %arg14[%c0_60, %c0_61, %c0_62] : memref<1x8x128xf32, #tpu.memory_space<vmem>>, vector<1x8x128xf32>
      %153 = vector.shape_cast %152 : vector<1x8x128xf32> to vector<8x128xf32>
      %154 = vector.shape_cast %151 : vector<8x128xf32> to vector<1x8x128xf32>
      tpu.vector_store %arg14[%c0_60, %c0_61, %c0_62], %154 {strides = array<i32>} : memref<1x8x128xf32, #tpu.memory_space<vmem>>, vector<1x8x128xf32>,
      %c0_63 = arith.constant 0 : index
      %c0_64 = arith.constant 0 : index
      %155 = vector.load %arg18[%c0_63, %c0_64] : memref<16x256xf32, #tpu.memory_space<vmem>>, vector<16x256xf32>
      %156 = vector.shape_cast %155 : vector<16x256xf32> to vector<1x16x256xf32>
      %cst_65 = arith.constant dense<0.000000e+00> : vector<1xf32>
      %157 = vector.multi_reduction <add>, %156, %cst_65 [1, 2] : vector<1x16x256xf32> to vector<1xf32>
      %158 = vector.shape_cast %157 : vector<1xf32> to vector<1x1x1xf32>
      %159 = vector.extract %158[0, 0, 0] : f32 from vector<1x1x1xf32>
      %160 = vector.broadcast %159 : f32 to vector<8x128xf32>
      %c0_66 = arith.constant 0 : index
      %c0_67 = arith.constant 0 : index
      %c0_68 = arith.constant 0 : index
      %161 = vector.load %arg15[%c0_66, %c0_67, %c0_68] : memref<1x8x128xf32, #tpu.memory_space<vmem>>, vector<1x8x128xf32>
      %162 = vector.shape_cast %161 : vector<1x8x128xf32> to vector<8x128xf32>
      %163 = vector.shape_cast %160 : vector<8x128xf32> to vector<1x8x128xf32>
      tpu.vector_store %arg15[%c0_66, %c0_67, %c0_68], %163 {strides = array<i32>} : memref<1x8x128xf32, #tpu.memory_space<vmem>>, vector<1x8x128xf32>,
      %c0_69 = arith.constant 0 : index
      %c0_70 = arith.constant 0 : index
      %164 = vector.load %arg19[%c0_69, %c0_70] : memref<8x256xf32, #tpu.memory_space<vmem>>, vector<8x256xf32>
      %165 = vector.shape_cast %164 : vector<8x256xf32> to vector<1x8x256xf32>
      %cst_71 = arith.constant dense<0.000000e+00> : vector<1xf32>
      %166 = vector.multi_reduction <add>, %165, %cst_71 [1, 2] : vector<1x8x256xf32> to vector<1xf32>
      %167 = vector.shape_cast %166 : vector<1xf32> to vector<1x1x1xf32>
      %168 = vector.extract %167[0, 0, 0] : f32 from vector<1x1x1xf32>
      %169 = vector.broadcast %168 : f32 to vector<8x128xf32>
      %c0_72 = arith.constant 0 : index
      %c0_73 = arith.constant 0 : index
      %c0_74 = arith.constant 0 : index
      %170 = vector.load %arg16[%c0_72, %c0_73, %c0_74] : memref<1x8x128xf32, #tpu.memory_space<vmem>>, vector<1x8x128xf32>
      %171 = vector.shape_cast %170 : vector<1x8x128xf32> to vector<8x128xf32>
      %172 = vector.shape_cast %169 : vector<8x128xf32> to vector<1x8x128xf32>
      tpu.vector_store %arg16[%c0_72, %c0_73, %c0_74], %172 {strides = array<i32>} : memref<1x8x128xf32, #tpu.memory_space<vmem>>, vector<1x8x128xf32>,
    } else {
    }
    return
  }
  func.func @transform_0(%arg0: i32, %arg1: i32) -> (i32, i32, i32) {
    %c0_i32 = arith.constant 0 : i32
    %c0_i32_0 = arith.constant 0 : i32
    return %arg0, %c0_i32, %arg1 : i32, i32, i32
  }
  func.func @transform_1(%arg0: i32, %arg1: i32) -> (i32, i32, i32) {
    %c0_i32 = arith.constant 0 : i32
    %c0_i32_0 = arith.constant 0 : i32
    return %arg0, %c0_i32, %arg1 : i32, i32, i32
  }
  func.func @transform_2(%arg0: i32, %arg1: i32) -> (i32, i32) {
    %c0_i32 = arith.constant 0 : i32
    %c0_i32_0 = arith.constant 0 : i32
    %c0_i32_1 = arith.constant 0 : i32
    return %c0_i32, %c0_i32_0 : i32, i32
  }
  func.func @transform_3(%arg0: i32, %arg1: i32) -> (i32, i32) {
    %c0_i32 = arith.constant 0 : i32
    %c0_i32_0 = arith.constant 0 : i32
    %c0_i32_1 = arith.constant 0 : i32
    return %c0_i32, %c0_i32_0 : i32, i32
  }
  func.func @transform_4(%arg0: i32, %arg1: i32) -> (i32, i32) {
    %c0_i32 = arith.constant 0 : i32
    %c0_i32_0 = arith.constant 0 : i32
    %c0_i32_1 = arith.constant 0 : i32
    return %c0_i32, %c0_i32_0 : i32, i32
  }
  func.func @transform_5(%arg0: i32, %arg1: i32) -> (i32, i32) {
    %c0_i32 = arith.constant 0 : i32
    %c0_i32_0 = arith.constant 0 : i32
    %c0_i32_1 = arith.constant 0 : i32
    return %c0_i32, %c0_i32_0 : i32, i32
  }
  func.func @transform_6(%arg0: i32, %arg1: i32) -> (i32, i32) {
    %c0_i32 = arith.constant 0 : i32
    %c0_i32_0 = arith.constant 0 : i32
    %c0_i32_1 = arith.constant 0 : i32
    return %c0_i32, %c0_i32_0 : i32, i32
  }
  func.func @transform_7(%arg0: i32, %arg1: i32) -> (i32, i32) {
    %c0_i32 = arith.constant 0 : i32
    %c0_i32_0 = arith.constant 0 : i32
    %c0_i32_1 = arith.constant 0 : i32
    return %c0_i32, %c0_i32_0 : i32, i32
  }
  func.func @transform_8(%arg0: i32, %arg1: i32) -> (i32, i32) {
    %c0_i32 = arith.constant 0 : i32
    %c0_i32_0 = arith.constant 0 : i32
    %c0_i32_1 = arith.constant 0 : i32
    return %c0_i32, %c0_i32_0 : i32, i32
  }
  func.func @transform_9(%arg0: i32, %arg1: i32) -> (i32, i32) {
    %c0_i32 = arith.constant 0 : i32
    %c0_i32_0 = arith.constant 0 : i32
    %c0_i32_1 = arith.constant 0 : i32
    return %c0_i32, %c0_i32_0 : i32, i32
  }
  func.func @transform_10(%arg0: i32, %arg1: i32) -> (i32, i32) {
    %c0_i32 = arith.constant 0 : i32
    %c0_i32_0 = arith.constant 0 : i32
    %c0_i32_1 = arith.constant 0 : i32
    return %c0_i32, %c0_i32_0 : i32, i32
  }
  func.func @transform_11(%arg0: i32, %arg1: i32) -> (i32, i32) {
    %c0_i32 = arith.constant 0 : i32
    %c0_i32_0 = arith.constant 0 : i32
    %c0_i32_1 = arith.constant 0 : i32
    return %c0_i32, %c0_i32_0 : i32, i32
  }
  func.func @transform_12(%arg0: i32, %arg1: i32) -> (i32, i32, i32) {
    %c0_i32 = arith.constant 0 : i32
    %c0_i32_0 = arith.constant 0 : i32
    %c0_i32_1 = arith.constant 0 : i32
    return %arg0, %c0_i32, %c0_i32_0 : i32, i32, i32
  }
  func.func @transform_13(%arg0: i32, %arg1: i32) -> (i32, i32, i32) {
    %c0_i32 = arith.constant 0 : i32
    %c0_i32_0 = arith.constant 0 : i32
    %c0_i32_1 = arith.constant 0 : i32
    return %arg0, %c0_i32, %c0_i32_0 : i32, i32, i32
  }
  func.func @transform_14(%arg0: i32, %arg1: i32) -> (i32, i32, i32) {
    %c0_i32 = arith.constant 0 : i32
    %c0_i32_0 = arith.constant 0 : i32
    %c0_i32_1 = arith.constant 0 : i32
    return %arg0, %c0_i32, %c0_i32_0 : i32, i32, i32
  }
}

</mosaic_0001>

<llo_original>
// kernel: loss_g.1
$region0: #{loss_g.1}
  #allocation0 [shape = 'u32[]', space=smem, size = 0x4, offset = 0x4, fixed_abs, tag = 'smem constant byte address 0x4 - core index']
  #allocation1 [shape = 'u32[144,128]{1,0:T(1,128)}', space=vmem, size = 0x12000, scoped, tag = 'internal scratch']
  #allocation2 [shape = 'f32[3,256]{1,0:T(4,128)}', space=vmem, size = 0x1000, scoped, tag = 'scratch operand']
  #allocation3 [shape = 'f32[16,256]{1,0:T(8,128)}', space=vmem, size = 0x4000, scoped, tag = 'scratch operand']
  #allocation4 [shape = 'f32[8,256]{1,0:T(8,128)}', space=vmem, size = 0x2000, scoped, tag = 'scratch operand']
  %s0 = inlined_call_operand.vmem [shape: f32[2,3,256], index: 0, kind: input, shape index: {}]
  %s1 = inlined_call_operand.vmem [shape: f32[2,3,256], index: 1, kind: input, shape index: {}]
  %s2 = inlined_call_operand.vmem [shape: f32[32,3], index: 2, kind: input, shape index: {}]
  %s3 = inlined_call_operand.vmem [shape: f32[32,1], index: 3, kind: input, shape index: {}]
  %s4 = inlined_call_operand.vmem [shape: f32[8,32], index: 4, kind: input, shape index: {}]
  %s5 = inlined_call_operand.vmem [shape: f32[8,1], index: 5, kind: input, shape index: {}]
  %s6 = inlined_call_operand.vmem [shape: f32[32,3], index: 6, kind: input, shape index: {}]
  %s7 = inlined_call_operand.vmem [shape: f32[32,1], index: 7, kind: input, shape index: {}]
  %s8 = inlined_call_operand.vmem [shape: f32[8,32], index: 8, kind: input, shape index: {}]
  %s9 = inlined_call_operand.vmem [shape: f32[8,1], index: 9, kind: input, shape index: {}]
  %s10 = inlined_call_operand.vmem [shape: f32[16,3], index: 10, kind: input, shape index: {}]
  %s11 = inlined_call_operand.vmem [shape: f32[16,1], index: 11, kind: input, shape index: {}]
  %s12 = inlined_call_operand.vmem [shape: f32[2,8,128], index: 12, kind: output, shape index: {0}]
  %s13 = inlined_call_operand.vmem [shape: f32[2,8,128], index: 13, kind: output, shape index: {1}]
  %s14 = inlined_call_operand.vmem [shape: f32[2,8,128], index: 14, kind: output, shape index: {2}]
  %15 = xla_tuple %s12, %s13, %s14
  %s16 = sld [smem:[#allocation0]]
  $region105: #{loss_g.1} parent=0
    _
  %s18 = ssub.s32 1, %s16
  %s19 = scalar_select 0, %s18, %s16
  loop: start=0, step=1, limit=4
  $region2: #{loss_g.1} parent=0 // loop_pre_header
    _
  $region3: #{loss_g.1} parent=0 // loop_header
    %s21 = sphi 0, %s25
    %p22 = scmp.ge.s32.totalorder %s21, 4
    %s28 = sphi 0, %s40
    %s29 = sphi 0, %s36
    %s30 = sphi 0, %s28
    %s31 = sphi 0, %s29
    %s32 = sphi 0, %s30
    %s33 = sphi 0, %s31
    %s45 = sphi 0, %s47
    %s48 = sphi 0, %s45
    %s49 = sphi 0, %s48
    %s65 = sphi 0, %s49
    %s73 = sphi 0, %s75
    %s76 = sphi 0, %s73
    %s77 = sphi 0, %s76
    %s93 = sphi 0, %s77
    %s97 = sphi 0, %s97
    %s99 = sphi 0, %s97
    %s100 = sphi 0, %s99
    %s114 = sphi 0, %s100
    %s118 = sphi 0, %s118
    %s120 = sphi 0, %s118
    %s121 = sphi 0, %s120
    %s135 = sphi 0, %s121
    %s139 = sphi 0, %s139
    %s141 = sphi 0, %s139
    %s142 = sphi 0, %s141
    %s156 = sphi 0, %s142
    %s160 = sphi 0, %s160
    %s162 = sphi 0, %s160
    %s163 = sphi 0, %s162
    %s177 = sphi 0, %s163
    %s181 = sphi 0, %s181
    %s183 = sphi 0, %s181
    %s184 = sphi 0, %s183
    %s198 = sphi 0, %s184
    %s202 = sphi 0, %s202
    %s204 = sphi 0, %s202
    %s205 = sphi 0, %s204
    %s219 = sphi 0, %s205
    %s223 = sphi 0, %s223
    %s225 = sphi 0, %s223
    %s226 = sphi 0, %s225
    %s240 = sphi 0, %s226
    %s244 = sphi 0, %s244
    %s246 = sphi 0, %s244
    %s247 = sphi 0, %s246
    %s261 = sphi 0, %s247
    %s265 = sphi 0, %s265
    %s267 = sphi 0, %s265
    %s268 = sphi 0, %s267
    %s282 = sphi 0, %s268
    %s286 = sphi 0, %s286
    %s288 = sphi 0, %s286
    %s289 = sphi 0, %s288
    %s303 = sphi 0, %s289
    %s309 = sphi 0, %s311
    %s312 = sphi 0, %s309
    %s313 = sphi 0, %s312
    %s329 = sphi 0, %s313
    %s335 = sphi 0, %s337
    %s338 = sphi 0, %s335
    %s339 = sphi 0, %s338
    %s355 = sphi 0, %s339
    %s361 = sphi 0, %s363
    %s364 = sphi 0, %s361
    %s365 = sphi 0, %s364
    %s381 = sphi 0, %s365
  $region4: #{loss_g.1} parent=0 // loop_header_branch
    %24 = sbr.rel (%p22) target = $region8
  $region5: #{loss_g.1} parent=0 // loop_body
    %s26 = ssub.s32 %s21, 1
    %s27 = ssub.s32 %s21, 2
    %s34 = sadd.s32 1, %s29
    %p35 = scmp.ge.s32.totalorder %s34, 1
    %s36 = scalar_select %p35, 0, %s34
    %s37 = sadd.s32 1, %s28
    %s38 = scalar_select %p35, %s37, %s28
    %p39 = scmp.ge.s32.totalorder %s38, 2
    %s40 = scalar_select %p39, 0, %s38
    %s41 = ssub.s32 %s28, %s40
    %s42 = ssub.s32 %s29, %s36
    %s43 = sor.u32 %s41, %s42
    %p44 = scmp.eq.s32.totalorder %s43, 0
    %s46 = sadd.s32 %s45, 1
    %s47 = scalar_select %p44, %s45, %s46
    %p50 = pneg %p44
    %p51 = scmp.eq.s32.totalorder %s21, 1
    %p52 = por %p50, %p51
    %p53 = scmp.ne.s32.totalorder %s45, %s48
    %p54 = scmp.eq.s32.totalorder %s21, 0
    %p55 = por %p53, %p54
    %p56 = scmp.ne.s32.totalorder %s45, %s48
    %p57 = scmp.eq.s32.totalorder %s26, 1
    %p58 = por %p56, %p57
    %p59 = scmp.ne.s32.totalorder %s48, %s49
    %p60 = scmp.eq.s32.totalorder %s26, 0
    %p61 = por %p59, %p60
    %p62 = scmp.ne.s32.totalorder %s48, %s49
    %p63 = scmp.eq.s32.totalorder %s27, 1
    %p64 = por %p62, %p63
    %p66 = scmp.ne.s32.totalorder %s49, %s65
    %p67 = scmp.eq.s32.totalorder %s27, 0
    %p68 = por %p66, %p67
    %s69 = ssub.s32 %s28, %s40
    %s70 = ssub.s32 %s29, %s36
    %s71 = sor.u32 %s69, %s70
    %p72 = scmp.eq.s32.totalorder %s71, 0
    %s74 = sadd.s32 %s73, 1
    %s75 = scalar_select %p72, %s73, %s74
    %p78 = pneg %p72
    %p79 = scmp.eq.s32.totalorder %s21, 1
    %p80 = por %p78, %p79
    %p81 = scmp.ne.s32.totalorder %s73, %s76
    %p82 = scmp.eq.s32.totalorder %s21, 0
    %p83 = por %p81, %p82
    %p84 = scmp.ne.s32.totalorder %s73, %s76
    %p85 = scmp.eq.s32.totalorder %s26, 1
    %p86 = por %p84, %p85
    %p87 = scmp.ne.s32.totalorder %s76, %s77
    %p88 = scmp.eq.s32.totalorder %s26, 0
    %p89 = por %p87, %p88
    %p90 = scmp.ne.s32.totalorder %s76, %s77
    %p91 = scmp.eq.s32.totalorder %s27, 1
    %p92 = por %p90, %p91
    %p94 = scmp.ne.s32.totalorder %s77, %s93
    %p95 = scmp.eq.s32.totalorder %s27, 0
    %p96 = por %p94, %p95
    %s98 = sadd.s32 %s97, 1
    %p101 = scmp.eq.s32.totalorder %s21, 1
    %p102 = scmp.ne.s32.totalorder %s97, %s99
    %p103 = scmp.eq.s32.totalorder %s21, 0
    %p104 = por %p102, %p103
    %p105 = scmp.ne.s32.totalorder %s97, %s99
    %p106 = scmp.eq.s32.totalorder %s26, 1
    %p107 = por %p105, %p106
    %p108 = scmp.ne.s32.totalorder %s99, %s100
    %p109 = scmp.eq.s32.totalorder %s26, 0
    %p110 = por %p108, %p109
    %p111 = scmp.ne.s32.totalorder %s99, %s100
    %p112 = scmp.eq.s32.totalorder %s27, 1
    %p113 = por %p111, %p112
    %p115 = scmp.ne.s32.totalorder %s100, %s114
    %p116 = scmp.eq.s32.totalorder %s27, 0
    %p117 = por %p115, %p116
    %s119 = sadd.s32 %s118, 1
    %p122 = scmp.eq.s32.totalorder %s21, 1
    %p123 = scmp.ne.s32.totalorder %s118, %s120
    %p124 = scmp.eq.s32.totalorder %s21, 0
    %p125 = por %p123, %p124
    %p126 = scmp.ne.s32.totalorder %s118, %s120
    %p127 = scmp.eq.s32.totalorder %s26, 1
    %p128 = por %p126, %p127
    %p129 = scmp.ne.s32.totalorder %s120, %s121
    %p130 = scmp.eq.s32.totalorder %s26, 0
    %p131 = por %p129, %p130
    %p132 = scmp.ne.s32.totalorder %s120, %s121
    %p133 = scmp.eq.s32.totalorder %s27, 1
    %p134 = por %p132, %p133
    %p136 = scmp.ne.s32.totalorder %s121, %s135
    %p137 = scmp.eq.s32.totalorder %s27, 0
    %p138 = por %p136, %p137
    %s140 = sadd.s32 %s139, 1
    %p143 = scmp.eq.s32.totalorder %s21, 1
    %p144 = scmp.ne.s32.totalorder %s139, %s141
    %p145 = scmp.eq.s32.totalorder %s21, 0
    %p146 = por %p144, %p145
    %p147 = scmp.ne.s32.totalorder %s139, %s141
    %p148 = scmp.eq.s32.totalorder %s26, 1
    %p149 = por %p147, %p148
    %p150 = scmp.ne.s32.totalorder %s141, %s142
    %p151 = scmp.eq.s32.totalorder %s26, 0
    %p152 = por %p150, %p151
    %p153 = scmp.ne.s32.totalorder %s141, %s142
    %p154 = scmp.eq.s32.totalorder %s27, 1
    %p155 = por %p153, %p154
    %p157 = scmp.ne.s32.totalorder %s142, %s156
    %p158 = scmp.eq.s32.totalorder %s27, 0
    %p159 = por %p157, %p158
    %s161 = sadd.s32 %s160, 1
    %p164 = scmp.eq.s32.totalorder %s21, 1
    %p165 = scmp.ne.s32.totalorder %s160, %s162
    %p166 = scmp.eq.s32.totalorder %s21, 0
    %p167 = por %p165, %p166
    %p168 = scmp.ne.s32.totalorder %s160, %s162
    %p169 = scmp.eq.s32.totalorder %s26, 1
    %p170 = por %p168, %p169
    %p171 = scmp.ne.s32.totalorder %s162, %s163
    %p172 = scmp.eq.s32.totalorder %s26, 0
    %p173 = por %p171, %p172
    %p174 = scmp.ne.s32.totalorder %s162, %s163
    %p175 = scmp.eq.s32.totalorder %s27, 1
    %p176 = por %p174, %p175
    %p178 = scmp.ne.s32.totalorder %s163, %s177
    %p179 = scmp.eq.s32.totalorder %s27, 0
    %p180 = por %p178, %p179
    %s182 = sadd.s32 %s181, 1
    %p185 = scmp.eq.s32.totalorder %s21, 1
    %p186 = scmp.ne.s32.totalorder %s181, %s183
    %p187 = scmp.eq.s32.totalorder %s21, 0
    %p188 = por %p186, %p187
    %p189 = scmp.ne.s32.totalorder %s181, %s183
    %p190 = scmp.eq.s32.totalorder %s26, 1
    %p191 = por %p189, %p190
    %p192 = scmp.ne.s32.totalorder %s183, %s184
    %p193 = scmp.eq.s32.totalorder %s26, 0
    %p194 = por %p192, %p193
    %p195 = scmp.ne.s32.totalorder %s183, %s184
    %p196 = scmp.eq.s32.totalorder %s27, 1
    %p197 = por %p195, %p196
    %p199 = scmp.ne.s32.totalorder %s184, %s198
    %p200 = scmp.eq.s32.totalorder %s27, 0
    %p201 = por %p199, %p200
    %s203 = sadd.s32 %s202, 1
    %p206 = scmp.eq.s32.totalorder %s21, 1
    %p207 = scmp.ne.s32.totalorder %s202, %s204
    %p208 = scmp.eq.s32.totalorder %s21, 0
    %p209 = por %p207, %p208
    %p210 = scmp.ne.s32.totalorder %s202, %s204
    %p211 = scmp.eq.s32.totalorder %s26, 1
    %p212 = por %p210, %p211
    %p213 = scmp.ne.s32.totalorder %s204, %s205
    %p214 = scmp.eq.s32.totalorder %s26, 0
    %p215 = por %p213, %p214
    %p216 = scmp.ne.s32.totalorder %s204, %s205
    %p217 = scmp.eq.s32.totalorder %s27, 1
    %p218 = por %p216, %p217
    %p220 = scmp.ne.s32.totalorder %s205, %s219
    %p221 = scmp.eq.s32.totalorder %s27, 0
    %p222 = por %p220, %p221
    %s224 = sadd.s32 %s223, 1
    %p227 = scmp.eq.s32.totalorder %s21, 1
    %p228 = scmp.ne.s32.totalorder %s223, %s225
    %p229 = scmp.eq.s32.totalorder %s21, 0
    %p230 = por %p228, %p229
    %p231 = scmp.ne.s32.totalorder %s223, %s225
    %p232 = scmp.eq.s32.totalorder %s26, 1
    %p233 = por %p231, %p232
    %p234 = scmp.ne.s32.totalorder %s225, %s226
    %p235 = scmp.eq.s32.totalorder %s26, 0
    %p236 = por %p234, %p235
    %p237 = scmp.ne.s32.totalorder %s225, %s226
    %p238 = scmp.eq.s32.totalorder %s27, 1
    %p239 = por %p237, %p238
    %p241 = scmp.ne.s32.totalorder %s226, %s240
    %p242 = scmp.eq.s32.totalorder %s27, 0
    %p243 = por %p241, %p242
    %s245 = sadd.s32 %s244, 1
    %p248 = scmp.eq.s32.totalorder %s21, 1
    %p249 = scmp.ne.s32.totalorder %s244, %s246
    %p250 = scmp.eq.s32.totalorder %s21, 0
    %p251 = por %p249, %p250
    %p252 = scmp.ne.s32.totalorder %s244, %s246
    %p253 = scmp.eq.s32.totalorder %s26, 1
    %p254 = por %p252, %p253
    %p255 = scmp.ne.s32.totalorder %s246, %s247
    %p256 = scmp.eq.s32.totalorder %s26, 0
    %p257 = por %p255, %p256
    %p258 = scmp.ne.s32.totalorder %s246, %s247
    %p259 = scmp.eq.s32.totalorder %s27, 1
    %p260 = por %p258, %p259
    %p262 = scmp.ne.s32.totalorder %s247, %s261
    %p263 = scmp.eq.s32.totalorder %s27, 0
    %p264 = por %p262, %p263
    %s266 = sadd.s32 %s265, 1
    %p269 = scmp.eq.s32.totalorder %s21, 1
    %p270 = scmp.ne.s32.totalorder %s265, %s267
    %p271 = scmp.eq.s32.totalorder %s21, 0
    %p272 = por %p270, %p271
    %p273 = scmp.ne.s32.totalorder %s265, %s267
    %p274 = scmp.eq.s32.totalorder %s26, 1
    %p275 = por %p273, %p274
    %p276 = scmp.ne.s32.totalorder %s267, %s268
    %p277 = scmp.eq.s32.totalorder %s26, 0
    %p278 = por %p276, %p277
    %p279 = scmp.ne.s32.totalorder %s267, %s268
    %p280 = scmp.eq.s32.totalorder %s27, 1
    %p281 = por %p279, %p280
    %p283 = scmp.ne.s32.totalorder %s268, %s282
    %p284 = scmp.eq.s32.totalorder %s27, 0
    %p285 = por %p283, %p284
    %s287 = sadd.s32 %s286, 1
    %p290 = scmp.eq.s32.totalorder %s21, 1
    %p291 = scmp.ne.s32.totalorder %s286, %s288
    %p292 = scmp.eq.s32.totalorder %s21, 0
    %p293 = por %p291, %p292
    %p294 = scmp.ne.s32.totalorder %s286, %s288
    %p295 = scmp.eq.s32.totalorder %s26, 1
    %p296 = por %p294, %p295
    %p297 = scmp.ne.s32.totalorder %s288, %s289
    %p298 = scmp.eq.s32.totalorder %s26, 0
    %p299 = por %p297, %p298
    %p300 = scmp.ne.s32.totalorder %s288, %s289
    %p301 = scmp.eq.s32.totalorder %s27, 1
    %p302 = por %p300, %p301
    %p304 = scmp.ne.s32.totalorder %s289, %s303
    %p305 = scmp.eq.s32.totalorder %s27, 0
    %p306 = por %p304, %p305
    %s307 = ssub.s32 %s28, %s40
    %p308 = scmp.eq.s32.totalorder %s307, 0
    %s310 = sadd.s32 %s309, 1
    %s311 = scalar_select %p308, %s309, %s310
    %p314 = pneg %p308
    %p315 = scmp.eq.s32.totalorder %s21, 1
    %p316 = por %p314, %p315
    %p317 = scmp.ne.s32.totalorder %s309, %s312
    %p318 = scmp.eq.s32.totalorder %s21, 0
    %p319 = por %p317, %p318
    %p320 = scmp.ne.s32.totalorder %s309, %s312
    %p321 = scmp.eq.s32.totalorder %s26, 1
    %p322 = por %p320, %p321
    %p323 = scmp.ne.s32.totalorder %s312, %s313
    %p324 = scmp.eq.s32.totalorder %s26, 0
    %p325 = por %p323, %p324
    %p326 = scmp.ne.s32.totalorder %s312, %s313
    %p327 = scmp.eq.s32.totalorder %s27, 1
    %p328 = por %p326, %p327
    %p330 = scmp.ne.s32.totalorder %s313, %s329
    %p331 = scmp.eq.s32.totalorder %s27, 0
    %p332 = por %p330, %p331
    %s333 = ssub.s32 %s28, %s40
    %p334 = scmp.eq.s32.totalorder %s333, 0
    %s336 = sadd.s32 %s335, 1
    %s337 = scalar_select %p334, %s335, %s336
    %p340 = pneg %p334
    %p341 = scmp.eq.s32.totalorder %s21, 1
    %p342 = por %p340, %p341
    %p343 = scmp.ne.s32.totalorder %s335, %s338
    %p344 = scmp.eq.s32.totalorder %s21, 0
    %p345 = por %p343, %p344
    %p346 = scmp.ne.s32.totalorder %s335, %s338
    %p347 = scmp.eq.s32.totalorder %s26, 1
    %p348 = por %p346, %p347
    %p349 = scmp.ne.s32.totalorder %s338, %s339
    %p350 = scmp.eq.s32.totalorder %s26, 0
    %p351 = por %p349, %p350
    %p352 = scmp.ne.s32.totalorder %s338, %s339
    %p353 = scmp.eq.s32.totalorder %s27, 1
    %p354 = por %p352, %p353
    %p356 = scmp.ne.s32.totalorder %s339, %s355
    %p357 = scmp.eq.s32.totalorder %s27, 0
    %p358 = por %p356, %p357
    %s359 = ssub.s32 %s28, %s40
    %p360 = scmp.eq.s32.totalorder %s359, 0
    %s362 = sadd.s32 %s361, 1
    %s363 = scalar_select %p360, %s361, %s362
    %p366 = pneg %p360
    %p367 = scmp.eq.s32.totalorder %s21, 1
    %p368 = por %p366, %p367
    %p369 = scmp.ne.s32.totalorder %s361, %s364
    %p370 = scmp.eq.s32.totalorder %s21, 0
    %p371 = por %p369, %p370
    %p372 = scmp.ne.s32.totalorder %s361, %s364
    %p373 = scmp.eq.s32.totalorder %s26, 1
    %p374 = por %p372, %p373
    %p375 = scmp.ne.s32.totalorder %s364, %s365
    %p376 = scmp.eq.s32.totalorder %s26, 0
    %p377 = por %p375, %p376
    %p378 = scmp.ne.s32.totalorder %s364, %s365
    %p379 = scmp.eq.s32.totalorder %s27, 1
    %p380 = por %p378, %p379
    %p382 = scmp.ne.s32.totalorder %s365, %s381
    %p383 = scmp.eq.s32.totalorder %s27, 0
    %p384 = por %p382, %p383
    %p385 = scmp.le.s32.totalorder 1, %s21
    %p386 = scmp.lt.s32.totalorder %s21, 3
    %p387 = pnand %p385, %p386
    %p388 = pneg %p387
    // Predicated region
    $region9: #{loss_g.1} parent=5 // pred_check
      _
    $region10: #{loss_g.1} parent=5 // pred_check_branch
      %390 = sbr.rel (%p387) target = $region12
    $region11: #{loss_g.1} parent=5 // pred_region
      %s391 = ssub.s32 %s21, 1
      // Predicated region
      $region13: #{loss_g.1} parent=11 // pred_check
        %p392 = pneg %p110
      $region14: #{loss_g.1} parent=11 // pred_check_branch
        %394 = sbr.rel (%p392) target = $region16
      $region15: #{loss_g.1} parent=11 // pred_region
        _
      $region16: #{loss_g.1} parent=11 // pred_fallthru
        _
      // Predicated region
      $region17: #{loss_g.1} parent=11 // pred_check
        %p395 = pneg %p131
      $region18: #{loss_g.1} parent=11 // pred_check_branch
        %397 = sbr.rel (%p395) target = $region20
      $region19: #{loss_g.1} parent=11 // pred_region
        _
      $region20: #{loss_g.1} parent=11 // pred_fallthru
        _
      // Predicated region
      $region21: #{loss_g.1} parent=11 // pred_check
        %p398 = pneg %p152
      $region22: #{loss_g.1} parent=11 // pred_check_branch
        %400 = sbr.rel (%p398) target = $region24
      $region23: #{loss_g.1} parent=11 // pred_region
        _
      $region24: #{loss_g.1} parent=11 // pred_fallthru
        _
      // Predicated region
      $region25: #{loss_g.1} parent=11 // pred_check
        %p401 = pneg %p173
      $region26: #{loss_g.1} parent=11 // pred_check_branch
        %403 = sbr.rel (%p401) target = $region28
      $region27: #{loss_g.1} parent=11 // pred_region
        _
      $region28: #{loss_g.1} parent=11 // pred_fallthru
        _
      // Predicated region
      $region29: #{loss_g.1} parent=11 // pred_check
        %p404 = pneg %p194
      $region30: #{loss_g.1} parent=11 // pred_check_branch
        %406 = sbr.rel (%p404) target = $region32
      $region31: #{loss_g.1} parent=11 // pred_region
        _
      $region32: #{loss_g.1} parent=11 // pred_fallthru
        _
      // Predicated region
      $region33: #{loss_g.1} parent=11 // pred_check
        %p407 = pneg %p215
      $region34: #{loss_g.1} parent=11 // pred_check_branch
        %409 = sbr.rel (%p407) target = $region36
      $region35: #{loss_g.1} parent=11 // pred_region
        _
      $region36: #{loss_g.1} parent=11 // pred_fallthru
        _
      // Predicated region
      $region37: #{loss_g.1} parent=11 // pred_check
        %p410 = pneg %p236
      $region38: #{loss_g.1} parent=11 // pred_check_branch
        %412 = sbr.rel (%p410) target = $region40
      $region39: #{loss_g.1} parent=11 // pred_region
        _
      $region40: #{loss_g.1} parent=11 // pred_fallthru
        _
      // Predicated region
      $region41: #{loss_g.1} parent=11 // pred_check
        %p413 = pneg %p257
      $region42: #{loss_g.1} parent=11 // pred_check_branch
        %415 = sbr.rel (%p413) target = $region44
      $region43: #{loss_g.1} parent=11 // pred_region
        _
      $region44: #{loss_g.1} parent=11 // pred_fallthru
        _
      // Predicated region
      $region45: #{loss_g.1} parent=11 // pred_check
        %p416 = pneg %p278
      $region46: #{loss_g.1} parent=11 // pred_check_branch
        %418 = sbr.rel (%p416) target = $region48
      $region47: #{loss_g.1} parent=11 // pred_region
        _
      $region48: #{loss_g.1} parent=11 // pred_fallthru
        _
      // Predicated region
      $region49: #{loss_g.1} parent=11 // pred_check
        %p419 = pneg %p299
      $region50: #{loss_g.1} parent=11 // pred_check_branch
        %421 = sbr.rel (%p419) target = $region52
      $region51: #{loss_g.1} parent=11 // pred_region
        _
      $region52: #{loss_g.1} parent=11 // pred_fallthru
        _
    $region12: #{loss_g.1} parent=5 // pred_fallthru
      _
    %p422 = scmp.lt.s32.totalorder %s21, 2
    // Predicated region
    $region53: #{loss_g.1} parent=5 // pred_check
      %p423 = pneg %p422
    $region54: #{loss_g.1} parent=5 // pred_check_branch
      %425 = sbr.rel (%p423) target = $region56
    $region55: #{loss_g.1} parent=5 // pred_region
      // Predicated region
      $region57: #{loss_g.1} parent=55 // pred_check
        %p426 = pneg %p55
      $region58: #{loss_g.1} parent=55 // pred_check_branch
        %428 = sbr.rel (%p426) target = $region60
      $region59: #{loss_g.1} parent=55 // pred_region
        %s429 = smul.u32 2, %s29
        %p430 = scmp.lt.s32.totalorder %s28, 1
        %s431 = scalar_select %p430, %s28, 1
        %p432 = scmp.lt.s32.totalorder %s429, 1
        %s433 = scalar_select %p432, %s429, 1
        %s434 = smul.addr %s431, 2
        %s435 = sadd.s32 %s433, %s434
        %s436 = smul.addr %s435, 4
        %s437 = scalar_lea.vmem %s0, %s436
        %s438 = smul.u32 2, %s29
      $region60: #{loss_g.1} parent=55 // pred_fallthru
        _
      // Predicated region
      $region61: #{loss_g.1} parent=55 // pred_check
        %p439 = pneg %p83
      $region62: #{loss_g.1} parent=55 // pred_check_branch
        %441 = sbr.rel (%p439) target = $region64
      $region63: #{loss_g.1} parent=55 // pred_region
        %s442 = smul.u32 2, %s29
        %p443 = scmp.lt.s32.totalorder %s28, 1
        %s444 = scalar_select %p443, %s28, 1
        %p445 = scmp.lt.s32.totalorder %s442, 1
        %s446 = scalar_select %p445, %s442, 1
        %s447 = smul.addr %s444, 2
        %s448 = sadd.s32 %s446, %s447
        %s449 = smul.addr %s448, 4
        %s450 = scalar_lea.vmem %s1, %s449
        %s451 = smul.u32 2, %s29
      $region64: #{loss_g.1} parent=55 // pred_fallthru
        _
    $region56: #{loss_g.1} parent=5 // pred_fallthru
      _
    %p452 = scmp.le.s32.totalorder 1, %s21
    %p453 = scmp.lt.s32.totalorder %s21, 3
    %p454 = pnand %p452, %p453
    %p455 = pneg %p454
    // Predicated region
    $region65: #{loss_g.1} parent=5 // pred_check
      _
    $region66: #{loss_g.1} parent=5 // pred_check_branch
      %457 = sbr.rel (%p454) target = $region68
    $region67: #{loss_g.1} parent=5 // pred_region
      %s458 = ssub.s32 %s21, 1
      %s459 = smul.u32 2, %s31
      %p460 = scmp.lt.s32.totalorder %s30, 1
      %s461 = scalar_select %p460, %s30, 1
      %p462 = scmp.lt.s32.totalorder %s459, 1
      %s463 = scalar_select %p462, %s459, 1
      %s464 = smul.addr %s461, 2
      %s465 = sadd.s32 %s463, %s464
      %s466 = smul.addr %s465, 4
      %s467 = scalar_lea.vmem %s0, %s466
      %p468 = pneg %p61
      %p469 = pneg %p58
      %s470 = smul.u32 2, %s31
      %p471 = scmp.lt.s32.totalorder %s30, 1
      %s472 = scalar_select %p471, %s30, 1
      %p473 = scmp.lt.s32.totalorder %s470, 1
      %s474 = scalar_select %p473, %s470, 1
      %s475 = smul.addr %s472, 2
      %s476 = sadd.s32 %s474, %s475
      %s477 = smul.addr %s476, 4
      %s478 = scalar_lea.vmem %s1, %s477
      %p479 = pneg %p89
      %p480 = pneg %p86
      %p481 = pneg %p110
      %p482 = pneg %p107
      %p483 = pneg %p131
      %p484 = pneg %p128
      %p485 = pneg %p152
      %p486 = pneg %p149
      %p487 = pneg %p173
      %p488 = pneg %p170
      %p489 = pneg %p194
      %p490 = pneg %p191
      %p491 = pneg %p215
      %p492 = pneg %p212
      %p493 = pneg %p236
      %p494 = pneg %p233
      %p495 = pneg %p257
      %p496 = pneg %p254
      %p497 = pneg %p278
      %p498 = pneg %p275
      %p499 = pneg %p299
      %p500 = pneg %p296
      %p501 = pneg %p325
      %p502 = pneg %p322
      %p503 = scmp.lt.s32.totalorder %s30, 1
      %s504 = scalar_select %p503, %s30, 1
      %s505 = smul.addr %s504, 8
      %s506 = scalar_lea.vmem %s12, %s505
      %p507 = pneg %p351
      %p508 = pneg %p348
      %p509 = scmp.lt.s32.totalorder %s30, 1
      %s510 = scalar_select %p509, %s30, 1
      %s511 = smul.addr %s510, 8
      %s512 = scalar_lea.vmem %s13, %s511
      %p513 = pneg %p377
      %p514 = pneg %p374
      %p515 = scmp.lt.s32.totalorder %s30, 1
      %s516 = scalar_select %p515, %s30, 1
      %s517 = smul.addr %s516, 8
      %s518 = scalar_lea.vmem %s14, %s517
      %s519 = smul.u32 2, %s31
      %p520 = scmp.lt.s32.totalorder %s30, 1
      %s521 = scalar_select %p520, %s30, 1
      %p522 = scmp.lt.s32.totalorder %s519, 1
      %s523 = scalar_select %p522, %s519, 1
      %s524 = smul.addr %s521, 2
      %s525 = sadd.s32 %s523, %s524
      %s526 = smul.addr %s525, 4
      %s527 = scalar_lea.vmem %s0, %s526
      %s528 = smul.u32 2, %s31
      %s529 = smul.u32 2, %s31
      %p530 = scmp.lt.s32.totalorder %s30, 1
      %s531 = scalar_select %p530, %s30, 1
      %p532 = scmp.lt.s32.totalorder %s529, 1
      %s533 = scalar_select %p532, %s529, 1
      %s534 = smul.addr %s531, 2
      %s535 = sadd.s32 %s533, %s534
      %s536 = smul.addr %s535, 4
      %s537 = scalar_lea.vmem %s1, %s536
      %s538 = smul.u32 2, %s31
      %p539 = scmp.lt.s32.totalorder %s30, 1
      %s540 = scalar_select %p539, %s30, 1
      %s541 = smul.addr %s540, 8
      %s542 = scalar_lea.vmem %s12, %s541
      %p543 = scmp.lt.s32.totalorder %s30, 1
      %s544 = scalar_select %p543, %s30, 1
      %s545 = smul.addr %s544, 8
      %s546 = scalar_lea.vmem %s13, %s545
      %p547 = scmp.lt.s32.totalorder %s30, 1
      %s548 = scalar_select %p547, %s30, 1
      %s549 = smul.addr %s548, 8
      %s550 = scalar_lea.vmem %s14, %s549
      %p551 = scmp.eq.s32.totalorder %s31, 0
      // Predicated region
      $region69: #{loss_g.1} parent=67 // pred_check
        %p552 = pneg %p551
      $region70: #{loss_g.1} parent=67 // pred_check_branch
        %554 = sbr.rel (%p552) target = $region72
      $region71: #{loss_g.1} parent=67 // pred_region
        %555 = vst [vmem:[#allocation2] sm:$0x77] 0.0
        %556 = vst [vmem:[#allocation3] sm:$0xff] 0.0
        %557 = vst [vmem:[#allocation3 + $0x8] sm:$0xff] 0.0
        %558 = vst [vmem:[#allocation3 + $0x10] sm:$0xff] 0.0
        %559 = vst [vmem:[#allocation3 + $0x18] sm:$0xff] 0.0
        %560 = vst [vmem:[#allocation4] sm:$0xff] 0.0
        %561 = vst [vmem:[#allocation4 + $0x8] sm:$0xff] 0.0
      $region72: #{loss_g.1} parent=67 // pred_fallthru
        _
      %v562 = vld [vmem:[%s527] sm:$0x77]
      %v563 = vld [vmem:[%s537] sm:$0x77]
      %v564 = vld [vmem:[%s2] sm:$0xff]
      %v565 = vld [vmem:[%s2 + $0x8] sm:$0xff]
      %v566 = vld [vmem:[%s2 + $0x10] sm:$0xff]
      %v567 = vld [vmem:[%s2 + $0x18] sm:$0xff]
      %v568 = vld [vmem:[%s3] sm:$0xff]
      %v569 = vld [vmem:[%s3 + $0x8] sm:$0xff]
      %v570 = vld [vmem:[%s3 + $0x10] sm:$0xff]
      %v571 = vld [vmem:[%s3 + $0x18] sm:$0xff]
      %v572 = vld [vmem:[%s6] sm:$0xff]
      %v573 = vld [vmem:[%s6 + $0x8] sm:$0xff]
      %v574 = vld [vmem:[%s6 + $0x10] sm:$0xff]
      %v575 = vld [vmem:[%s6 + $0x18] sm:$0xff]
      %v576 = vld [vmem:[%s7] sm:$0xff]
      %v577 = vld [vmem:[%s7 + $0x8] sm:$0xff]
      %v578 = vld [vmem:[%s7 + $0x10] sm:$0xff]
      %v579 = vld [vmem:[%s7 + $0x18] sm:$0xff]
      %v580 = vld [vmem:[%s10] sm:$0xff]
      %v581 = vld [vmem:[%s10 + $0x8] sm:$0xff]
      %v582 = vld [vmem:[%s11] sm:$0xff]
      %v583 = vld [vmem:[%s11 + $0x8] sm:$0xff]
      %585 = vset.pattern.permute.xlu0 0
      %586 = vperm.xlu0 %585, %v564
      %v587 = vpop.permute.xlu0 %586
      %590 = vset.pattern.permute.xlu0 0
      %591 = vperm.xlu0 %590, %v565
      %v592 = vpop.permute.xlu0 %591
      %595 = vset.pattern.permute.xlu0 0
      %596 = vperm.xlu0 %595, %v566
      %v597 = vpop.permute.xlu0 %596
      %600 = vset.pattern.permute.xlu0 0
      %601 = vperm.xlu0 %600, %v567
      %v602 = vpop.permute.xlu0 %601
      %v605 = vlaneseq
      %v606 = vshrl.u32 %v605, 7
      %v607 = vsub.s32 0, %v606
      %v608 = vrot.slane %v562, %v607
      %v609 = vlaneseq
      %v610 = vshrl.u32 %v609, 7
      %v611 = vsub.s32 4, %v610
      %v612 = vrot.slane %v562, %v611
      %v615 = vlaneseq
      %v616 = vshrl.u32 %v615, 7
      %v617 = vsub.s32 0, %v616
      %v618 = vrot.slane %v608, %v617
      %v619 = vlaneseq
      %v620 = vshrl.u32 %v619, 7
      %v621 = vsub.s32 0, %v620
      %v622 = vrot.slane %v612, %v621
      %v623 = vmul.f32 %v587, %v618
      %v624 = vmul.f32 %v587, %v622
      %v625 = vmul.f32 %v592, %v618
      %v626 = vmul.f32 %v592, %v622
      %v627 = vmul.f32 %v597, %v618
      %v628 = vmul.f32 %v597, %v622
      %v629 = vmul.f32 %v602, %v618
      %v630 = vmul.f32 %v602, %v622
      %631 = vset.pattern.permute.xlu0 1
      %632 = vperm.xlu0 %631, %v564
      %v633 = vpop.permute.xlu0 %632
      %635 = vset.pattern.permute.xlu0 1
      %636 = vperm.xlu0 %635, %v565
      %v637 = vpop.permute.xlu0 %636
      %639 = vset.pattern.permute.xlu0 1
      %640 = vperm.xlu0 %639, %v566
      %v641 = vpop.permute.xlu0 %640
      %643 = vset.pattern.permute.xlu0 1
      %644 = vperm.xlu0 %643, %v567
      %v645 = vpop.permute.xlu0 %644
      %v647 = vlaneseq
      %v648 = vshrl.u32 %v647, 7
      %v649 = vsub.s32 1, %v648
      %v650 = vrot.slane %v562, %v649
      %v651 = vlaneseq
      %v652 = vshrl.u32 %v651, 7
      %v653 = vsub.s32 5, %v652
      %v654 = vrot.slane %v562, %v653
      %v657 = vlaneseq
      %v658 = vshrl.u32 %v657, 7
      %v659 = vsub.s32 1, %v658
      %v660 = vrot.slane %v650, %v659
      %v661 = vlaneseq
      %v662 = vshrl.u32 %v661, 7
      %v663 = vsub.s32 1, %v662
      %v664 = vrot.slane %v654, %v663
      %v665 = vmul.f32 %v633, %v660
      %v666 = vmul.f32 %v633, %v664
      %v667 = vmul.f32 %v637, %v660
      %v668 = vmul.f32 %v637, %v664
      %v669 = vmul.f32 %v641, %v660
      %v670 = vmul.f32 %v641, %v664
      %v671 = vmul.f32 %v645, %v660
      %v672 = vmul.f32 %v645, %v664
      %v673 = vadd.f32 %v623, %v665
      %v674 = vadd.f32 %v624, %v666
      %v675 = vadd.f32 %v625, %v667
      %v676 = vadd.f32 %v626, %v668
      %v677 = vadd.f32 %v627, %v669
      %v678 = vadd.f32 %v628, %v670
      %v679 = vadd.f32 %v629, %v671
      %v680 = vadd.f32 %v630, %v672
      %681 = vset.pattern.permute.xlu0 2
      %682 = vperm.xlu0 %681, %v564
      %v683 = vpop.permute.xlu0 %682
      %685 = vset.pattern.permute.xlu0 2
      %686 = vperm.xlu0 %685, %v565
      %v687 = vpop.permute.xlu0 %686
      %689 = vset.pattern.permute.xlu0 2
      %690 = vperm.xlu0 %689, %v566
      %v691 = vpop.permute.xlu0 %690
      %693 = vset.pattern.permute.xlu0 2
      %694 = vperm.xlu0 %693, %v567
      %v695 = vpop.permute.xlu0 %694
      %v697 = vlaneseq
      %v698 = vshrl.u32 %v697, 7
      %v699 = vsub.s32 2, %v698
      %v700 = vrot.slane %v562, %v699
      %v701 = vlaneseq
      %v702 = vshrl.u32 %v701, 7
      %v703 = vsub.s32 6, %v702
      %v704 = vrot.slane %v562, %v703
      %v707 = vlaneseq
      %v708 = vshrl.u32 %v707, 7
      %v709 = vsub.s32 2, %v708
      %v710 = vrot.slane %v700, %v709
      %v711 = vlaneseq
      %v712 = vshrl.u32 %v711, 7
      %v713 = vsub.s32 2, %v712
      %v714 = vrot.slane %v704, %v713
      %v715 = vmul.f32 %v683, %v710
      %v716 = vmul.f32 %v683, %v714
      %v717 = vmul.f32 %v687, %v710
      %v718 = vmul.f32 %v687, %v714
      %v719 = vmul.f32 %v691, %v710
      %v720 = vmul.f32 %v691, %v714
      %v721 = vmul.f32 %v695, %v710
      %v722 = vmul.f32 %v695, %v714
      %v723 = vadd.f32 %v673, %v715
      %v724 = vadd.f32 %v674, %v716
      %v725 = vadd.f32 %v675, %v717
      %v726 = vadd.f32 %v676, %v718
      %v727 = vadd.f32 %v677, %v719
      %v728 = vadd.f32 %v678, %v720
      %v729 = vadd.f32 %v679, %v721
      %v730 = vadd.f32 %v680, %v722
      %732 = vset.pattern.permute.xlu0 0
      %733 = vperm.xlu0 %732, %v568
      %v734 = vpop.permute.xlu0 %733
      %737 = vset.pattern.permute.xlu0 0
      %738 = vperm.xlu0 %737, %v569
      %v739 = vpop.permute.xlu0 %738
      %742 = vset.pattern.permute.xlu0 0
      %743 = vperm.xlu0 %742, %v570
      %v744 = vpop.permute.xlu0 %743
      %747 = vset.pattern.permute.xlu0 0
      %748 = vperm.xlu0 %747, %v571
      %v749 = vpop.permute.xlu0 %748
      %v751 = vadd.f32 %v723, %v734
      %v752 = vadd.f32 %v724, %v734
      %v753 = vadd.f32 %v725, %v739
      %v754 = vadd.f32 %v726, %v739
      %v755 = vadd.f32 %v727, %v744
      %v756 = vadd.f32 %v728, %v744
      %v757 = vadd.f32 %v729, %v749
      %v758 = vadd.f32 %v730, %v749
      %v759 = vmax.f32 %v751, 0.0
      %v760 = vmax.f32 %v752, 0.0
      %v761 = vmax.f32 %v753, 0.0
      %v762 = vmax.f32 %v754, 0.0
      %v763 = vmax.f32 %v755, 0.0
      %v764 = vmax.f32 %v756, 0.0
      %v765 = vmax.f32 %v757, 0.0
      %v766 = vmax.f32 %v758, 0.0
      %v767 = vld [vmem:[%s4] sm:$0xff]
      %v768 = vld [vmem:[%s5] sm:$0xff]
      %770 = vset.pattern.permute.xlu0 0
      %771 = vperm.xlu0 %770, %v768
      %v772 = vpop.permute.xlu0 %771
      %vm774 = vcmask 261120
      %v776 = vsel %vm774, %v767, 0
      %778 = vmatprep.subr.mxu0 %v760
      %779 = vmatpush1.msra.mxu0 %v759
      %780 = vmatprep.subr.mxu0 %v762
      %781 = vmatpush1.msra.mxu0 %v761
      %782 = vmatprep.subr.mxu0 %v764
      %783 = vmatpush1.msra.mxu0 %v763
      %784 = vmatprep.subr.mxu0 %v766
      %785 = vmatpush1.msra.mxu0 %v765
      %786 = vmatprep.subr.mxu0 0.0
      %787 = vmatpush1.msra.mxu0 0.0
      %788 = vmatprep.subr.mxu0 0.0
      %789 = vmatpush1.msra.mxu0 0.0
      %790 = vmatprep.subr.mxu0 0.0
      %791 = vmatpush1.msra.mxu0 0.0
      %792 = vmatprep.subr.mxu0 0.0
      %793 = vmatpush1.msra.mxu0 0.0
      %794 = vmatprep.subr.mxu0 0.0
      %795 = vmatpush1.msra.mxu0 0.0
      %796 = vmatprep.subr.mxu0 0.0
      %797 = vmatpush1.msra.mxu0 0.0
      %798 = vmatprep.subr.mxu0 0.0
      %799 = vmatpush1.msra.mxu0 0.0
      %800 = vmatprep.subr.mxu0 0.0
      %801 = vmatpush1.msra.mxu0 0.0
      %802 = vmatprep.subr.mxu0 0.0
      %803 = vmatpush1.msra.mxu0 0.0
      %804 = vmatprep.subr.mxu0 0.0
      %805 = vmatpush1.msra.mxu0 0.0
      %806 = vmatprep.subr.mxu0 0.0
      %807 = vmatpush1.msra.mxu0 0.0
      %808 = vmatprep.subr.mxu0 0.0
      %809 = vmatpush1.msra.mxu0 0.0
      %810 = vmatprep.subr.mxu0 0.0
      %811 = vmatpush1.msra.mxu0 0.0
      %812 = vmatprep.subr.mxu0 0.0
      %813 = vmatpush1.msra.mxu0 0.0
      %814 = vmatprep.subr.mxu0 0.0
      %815 = vmatpush1.msra.mxu0 0.0
      %816 = vmatprep.subr.mxu0 0.0
      %817 = vmatpush1.msra.mxu0 0.0
      %818 = vmatprep.subr.mxu0 0.0
      %819 = vmatpush1.msra.mxu0 0.0
      %820 = vmatprep.subr.mxu0 0.0
      %821 = vmatpush1.msra.mxu0 0.0
      %822 = vmatprep.subr.mxu0 0.0
      %823 = vmatpush1.msra.mxu0 0.0
      %824 = vmatprep.subr.mxu0 0.0
      %825 = vmatpush1.msra.mxu0 0.0
      %826 = vmatprep.subr.mxu0 0.0
      %827 = vmatpush1.msra.mxu0 0.0
      %828 = vmatprep.subr.mxu0 0.0
      %829 = vmatpush1.msra.mxu0 0.0
      %830 = vmatprep.subr.mxu0 0.0
      %831 = vmatpush1.msra.mxu0 0.0
      %832 = vmatprep.subr.mxu0 0.0
      %833 = vmatpush1.msra.mxu0 0.0
      %834 = vmatprep.subr.mxu0 0.0
      %835 = vmatpush1.msra.mxu0 0.0
      %836 = vmatprep.subr.mxu0 0.0
      %837 = vmatpush1.msra.mxu0 0.0
      %838 = vmatprep.subr.mxu0 0.0
      %839 = vmatpush1.msra.mxu0 0.0
      %840 = vmatprep.subr.mxu0 0.0
      %841 = vmatpush1.msra.mxu0 0.0
      %842 = vmatprep.mubr.f32.mxu0 0.0
      %843 = vmatmul.mubr.f32.gmra.mrb[0].mxu0 %v776
      %v844 = vpop.f32.mrb[0].mxu0
      %v845 = vadd.f32 %v772, %v844
      %v846 = vpop.f32.mrb[0].mxu0
      %v847 = vadd.f32 %v772, %v846
      %848 = vdwg.mxu0
      %v849 = vtanh.pop %v845
      %v850 = vtanh.pop %v847
      %852 = vset.pattern.permute.xlu0 0
      %853 = vperm.xlu0 %852, %v572
      %v854 = vpop.permute.xlu0 %853
      %857 = vset.pattern.permute.xlu0 0
      %858 = vperm.xlu0 %857, %v573
      %v859 = vpop.permute.xlu0 %858
      %862 = vset.pattern.permute.xlu0 0
      %863 = vperm.xlu0 %862, %v574
      %v864 = vpop.permute.xlu0 %863
      %867 = vset.pattern.permute.xlu0 0
      %868 = vperm.xlu0 %867, %v575
      %v869 = vpop.permute.xlu0 %868
      %v871 = vlaneseq
      %v872 = vshrl.u32 %v871, 7
      %v873 = vsub.s32 0, %v872
      %v874 = vrot.slane %v849, %v873
      %v875 = vlaneseq
      %v876 = vshrl.u32 %v875, 7
      %v877 = vsub.s32 0, %v876
      %v878 = vrot.slane %v850, %v877
      %v879 = vmul.f32 %v854, %v874
      %v880 = vmul.f32 %v854, %v878
      %v881 = vmul.f32 %v859, %v874
      %v882 = vmul.f32 %v859, %v878
      %v883 = vmul.f32 %v864, %v874
      %v884 = vmul.f32 %v864, %v878
      %v885 = vmul.f32 %v869, %v874
      %v886 = vmul.f32 %v869, %v878
      %887 = vset.pattern.permute.xlu0 1
      %888 = vperm.xlu0 %887, %v572
      %v889 = vpop.permute.xlu0 %888
      %891 = vset.pattern.permute.xlu0 1
      %892 = vperm.xlu0 %891, %v573
      %v893 = vpop.permute.xlu0 %892
      %895 = vset.pattern.permute.xlu0 1
      %896 = vperm.xlu0 %895, %v574
      %v897 = vpop.permute.xlu0 %896
      %899 = vset.pattern.permute.xlu0 1
      %900 = vperm.xlu0 %899, %v575
      %v901 = vpop.permute.xlu0 %900
      %v903 = vlaneseq
      %v904 = vshrl.u32 %v903, 7
      %v905 = vsub.s32 1, %v904
      %v906 = vrot.slane %v849, %v905
      %v907 = vlaneseq
      %v908 = vshrl.u32 %v907, 7
      %v909 = vsub.s32 1, %v908
      %v910 = vrot.slane %v850, %v909
      %v911 = vmul.f32 %v889, %v906
      %v912 = vmul.f32 %v889, %v910
      %v913 = vmul.f32 %v893, %v906
      %v914 = vmul.f32 %v893, %v910
      %v915 = vmul.f32 %v897, %v906
      %v916 = vmul.f32 %v897, %v910
      %v917 = vmul.f32 %v901, %v906
      %v918 = vmul.f32 %v901, %v910
      %v919 = vadd.f32 %v879, %v911
      %v920 = vadd.f32 %v880, %v912
      %v921 = vadd.f32 %v881, %v913
      %v922 = vadd.f32 %v882, %v914
      %v923 = vadd.f32 %v883, %v915
      %v924 = vadd.f32 %v884, %v916
      %v925 = vadd.f32 %v885, %v917
      %v926 = vadd.f32 %v886, %v918
      %927 = vset.pattern.permute.xlu0 2
      %928 = vperm.xlu0 %927, %v572
      %v929 = vpop.permute.xlu0 %928
      %931 = vset.pattern.permute.xlu0 2
      %932 = vperm.xlu0 %931, %v573
      %v933 = vpop.permute.xlu0 %932
      %935 = vset.pattern.permute.xlu0 2
      %936 = vperm.xlu0 %935, %v574
      %v937 = vpop.permute.xlu0 %936
      %939 = vset.pattern.permute.xlu0 2
      %940 = vperm.xlu0 %939, %v575
      %v941 = vpop.permute.xlu0 %940
      %v943 = vlaneseq
      %v944 = vshrl.u32 %v943, 7
      %v945 = vsub.s32 2, %v944
      %v946 = vrot.slane %v849, %v945
      %v947 = vlaneseq
      %v948 = vshrl.u32 %v947, 7
      %v949 = vsub.s32 2, %v948
      %v950 = vrot.slane %v850, %v949
      %v951 = vmul.f32 %v929, %v946
      %v952 = vmul.f32 %v929, %v950
      %v953 = vmul.f32 %v933, %v946
      %v954 = vmul.f32 %v933, %v950
      %v955 = vmul.f32 %v937, %v946
      %v956 = vmul.f32 %v937, %v950
      %v957 = vmul.f32 %v941, %v946
      %v958 = vmul.f32 %v941, %v950
      %v959 = vadd.f32 %v919, %v951
      %v960 = vadd.f32 %v920, %v952
      %v961 = vadd.f32 %v921, %v953
      %v962 = vadd.f32 %v922, %v954
      %v963 = vadd.f32 %v923, %v955
      %v964 = vadd.f32 %v924, %v956
      %v965 = vadd.f32 %v925, %v957
      %v966 = vadd.f32 %v926, %v958
      %968 = vset.pattern.permute.xlu0 0
      %969 = vperm.xlu0 %968, %v576
      %v970 = vpop.permute.xlu0 %969
      %973 = vset.pattern.permute.xlu0 0
      %974 = vperm.xlu0 %973, %v577
      %v975 = vpop.permute.xlu0 %974
      %978 = vset.pattern.permute.xlu0 0
      %979 = vperm.xlu0 %978, %v578
      %v980 = vpop.permute.xlu0 %979
      %983 = vset.pattern.permute.xlu0 0
      %984 = vperm.xlu0 %983, %v579
      %v985 = vpop.permute.xlu0 %984
      %v987 = vadd.f32 %v959, %v970
      %v988 = vadd.f32 %v960, %v970
      %v989 = vadd.f32 %v961, %v975
      %v990 = vadd.f32 %v962, %v975
      %v991 = vadd.f32 %v963, %v980
      %v992 = vadd.f32 %v964, %v980
      %v993 = vadd.f32 %v965, %v985
      %v994 = vadd.f32 %v966, %v985
      %v995 = vmax.f32 %v987, 0.0
      %v996 = vmax.f32 %v988, 0.0
      %v997 = vmax.f32 %v989, 0.0
      %v998 = vmax.f32 %v990, 0.0
      %v999 = vmax.f32 %v991, 0.0
      %v1000 = vmax.f32 %v992, 0.0
      %v1001 = vmax.f32 %v993, 0.0
      %v1002 = vmax.f32 %v994, 0.0
      %v1003 = vld [vmem:[%s8] sm:$0xff]
      %v1004 = vld [vmem:[%s9] sm:$0xff]
      %1006 = vset.pattern.permute.xlu0 0
      %1007 = vperm.xlu0 %1006, %v1004
      %v1008 = vpop.permute.xlu0 %1007
      %v1011 = vsel %vm774, %v1003, 0
      %1013 = vmatprep.subr.mxu0 %v996
      %1014 = vmatpush1.msra.mxu0 %v995
      %1015 = vmatprep.subr.mxu0 %v998
      %1016 = vmatpush1.msra.mxu0 %v997
      %1017 = vmatprep.subr.mxu0 %v1000
      %1018 = vmatpush1.msra.mxu0 %v999
      %1019 = vmatprep.subr.mxu0 %v1002
      %1020 = vmatpush1.msra.mxu0 %v1001
      %1021 = vmatprep.subr.mxu0 0.0
      %1022 = vmatpush1.msra.mxu0 0.0
      %1023 = vmatprep.subr.mxu0 0.0
      %1024 = vmatpush1.msra.mxu0 0.0
      %1025 = vmatprep.subr.mxu0 0.0
      %1026 = vmatpush1.msra.mxu0 0.0
      %1027 = vmatprep.subr.mxu0 0.0
      %1028 = vmatpush1.msra.mxu0 0.0
      %1029 = vmatprep.subr.mxu0 0.0
      %1030 = vmatpush1.msra.mxu0 0.0
      %1031 = vmatprep.subr.mxu0 0.0
      %1032 = vmatpush1.msra.mxu0 0.0
      %1033 = vmatprep.subr.mxu0 0.0
      %1034 = vmatpush1.msra.mxu0 0.0
      %1035 = vmatprep.subr.mxu0 0.0
      %1036 = vmatpush1.msra.mxu0 0.0
      %1037 = vmatprep.subr.mxu0 0.0
      %1038 = vmatpush1.msra.mxu0 0.0
      %1039 = vmatprep.subr.mxu0 0.0
      %1040 = vmatpush1.msra.mxu0 0.0
      %1041 = vmatprep.subr.mxu0 0.0
      %1042 = vmatpush1.msra.mxu0 0.0
      %1043 = vmatprep.subr.mxu0 0.0
      %1044 = vmatpush1.msra.mxu0 0.0
      %1045 = vmatprep.subr.mxu0 0.0
      %1046 = vmatpush1.msra.mxu0 0.0
      %1047 = vmatprep.subr.mxu0 0.0
      %1048 = vmatpush1.msra.mxu0 0.0
      %1049 = vmatprep.subr.mxu0 0.0
      %1050 = vmatpush1.msra.mxu0 0.0
      %1051 = vmatprep.subr.mxu0 0.0
      %1052 = vmatpush1.msra.mxu0 0.0
      %1053 = vmatprep.subr.mxu0 0.0
      %1054 = vmatpush1.msra.mxu0 0.0
      %1055 = vmatprep.subr.mxu0 0.0
      %1056 = vmatpush1.msra.mxu0 0.0
      %1057 = vmatprep.subr.mxu0 0.0
      %1058 = vmatpush1.msra.mxu0 0.0
      %1059 = vmatprep.subr.mxu0 0.0
      %1060 = vmatpush1.msra.mxu0 0.0
      %1061 = vmatprep.subr.mxu0 0.0
      %1062 = vmatpush1.msra.mxu0 0.0
      %1063 = vmatprep.subr.mxu0 0.0
      %1064 = vmatpush1.msra.mxu0 0.0
      %1065 = vmatprep.subr.mxu0 0.0
      %1066 = vmatpush1.msra.mxu0 0.0
      %1067 = vmatprep.subr.mxu0 0.0
      %1068 = vmatpush1.msra.mxu0 0.0
      %1069 = vmatprep.subr.mxu0 0.0
      %1070 = vmatpush1.msra.mxu0 0.0
      %1071 = vmatprep.subr.mxu0 0.0
      %1072 = vmatpush1.msra.mxu0 0.0
      %1073 = vmatprep.subr.mxu0 0.0
      %1074 = vmatpush1.msra.mxu0 0.0
      %1075 = vmatprep.subr.mxu0 0.0
      %1076 = vmatpush1.msra.mxu0 0.0
      %1077 = vmatprep.mubr.f32.mxu0 0.0
      %1078 = vmatmul.mubr.f32.gmra.mrb[0].mxu0 %v1011
      %v1079 = vpop.f32.mrb[0].mxu0
      %v1080 = vadd.f32 %v1008, %v1079
      %v1081 = vpop.f32.mrb[0].mxu0
      %v1082 = vadd.f32 %v1008, %v1081
      %1083 = vdwg.mxu0
      %v1084 = vmul.f32 %v849, 0.5
      %v1085 = vmul.f32 %v850, 0.5
      %v1086 = vadd.f32 %v1084, 0.5
      %v1087 = vadd.f32 %v1085, 0.5
      %1089 = vset.pattern.permute.xlu0 0
      %1090 = vperm.xlu0 %1089, %v580
      %v1091 = vpop.permute.xlu0 %1090
      %1094 = vset.pattern.permute.xlu0 0
      %1095 = vperm.xlu0 %1094, %v581
      %v1096 = vpop.permute.xlu0 %1095
      %v1098 = vlaneseq
      %v1099 = vshrl.u32 %v1098, 7
      %v1100 = vsub.s32 0, %v1099
      %v1101 = vrot.slane %v1086, %v1100
      %v1102 = vlaneseq
      %v1103 = vshrl.u32 %v1102, 7
      %v1104 = vsub.s32 0, %v1103
      %v1105 = vrot.slane %v1087, %v1104
      %v1106 = vmul.f32 %v1091, %v1101
      %v1107 = vmul.f32 %v1091, %v1105
      %v1108 = vmul.f32 %v1096, %v1101
      %v1109 = vmul.f32 %v1096, %v1105
      %1110 = vset.pattern.permute.xlu0 1
      %1111 = vperm.xlu0 %1110, %v580
      %v1112 = vpop.permute.xlu0 %1111
      %1114 = vset.pattern.permute.xlu0 1
      %1115 = vperm.xlu0 %1114, %v581
      %v1116 = vpop.permute.xlu0 %1115
      %v1118 = vlaneseq
      %v1119 = vshrl.u32 %v1118, 7
      %v1120 = vsub.s32 1, %v1119
      %v1121 = vrot.slane %v1086, %v1120
      %v1122 = vlaneseq
      %v1123 = vshrl.u32 %v1122, 7
      %v1124 = vsub.s32 1, %v1123
      %v1125 = vrot.slane %v1087, %v1124
      %v1126 = vmul.f32 %v1112, %v1121
      %v1127 = vmul.f32 %v1112, %v1125
      %v1128 = vmul.f32 %v1116, %v1121
      %v1129 = vmul.f32 %v1116, %v1125
      %v1130 = vadd.f32 %v1106, %v1126
      %v1131 = vadd.f32 %v1107, %v1127
      %v1132 = vadd.f32 %v1108, %v1128
      %v1133 = vadd.f32 %v1109, %v1129
      %1134 = vset.pattern.permute.xlu0 2
      %1135 = vperm.xlu0 %1134, %v580
      %v1136 = vpop.permute.xlu0 %1135
      %1138 = vset.pattern.permute.xlu0 2
      %1139 = vperm.xlu0 %1138, %v581
      %v1140 = vpop.permute.xlu0 %1139
      %v1142 = vlaneseq
      %v1143 = vshrl.u32 %v1142, 7
      %v1144 = vsub.s32 2, %v1143
      %v1145 = vrot.slane %v1086, %v1144
      %v1146 = vlaneseq
      %v1147 = vshrl.u32 %v1146, 7
      %v1148 = vsub.s32 2, %v1147
      %v1149 = vrot.slane %v1087, %v1148
      %v1150 = vmul.f32 %v1136, %v1145
      %v1151 = vmul.f32 %v1136, %v1149
      %v1152 = vmul.f32 %v1140, %v1145
      %v1153 = vmul.f32 %v1140, %v1149
      %v1154 = vadd.f32 %v1130, %v1150
      %v1155 = vadd.f32 %v1131, %v1151
      %v1156 = vadd.f32 %v1132, %v1152
      %v1157 = vadd.f32 %v1133, %v1153
      %1159 = vset.pattern.permute.xlu0 0
      %1160 = vperm.xlu0 %1159, %v582
      %v1161 = vpop.permute.xlu0 %1160
      %1164 = vset.pattern.permute.xlu0 0
      %1165 = vperm.xlu0 %1164, %v583
      %v1166 = vpop.permute.xlu0 %1165
      %v1168 = vadd.f32 %v1154, %v1161
      %v1169 = vadd.f32 %v1155, %v1161
      %v1170 = vadd.f32 %v1156, %v1166
      %v1171 = vadd.f32 %v1157, %v1166
      %v1172 = vmax.f32 %v1168, 0.0
      %v1173 = vmax.f32 %v1169, 0.0
      %v1174 = vmax.f32 %v1170, 0.0
      %v1175 = vmax.f32 %v1171, 0.0
      %v1176 = vmul.f32 %v563, 0.5
      %v1177 = vadd.f32 %v1176, 0.5
      %v1179 = vlaneseq
      %v1180 = vshrl.u32 %v1179, 7
      %v1181 = vsub.s32 0, %v1180
      %v1182 = vrot.slane %v1177, %v1181
      %v1183 = vlaneseq
      %v1184 = vshrl.u32 %v1183, 7
      %v1185 = vsub.s32 4, %v1184
      %v1186 = vrot.slane %v1177, %v1185
      %v1189 = vlaneseq
      %v1190 = vshrl.u32 %v1189, 7
      %v1191 = vsub.s32 0, %v1190
      %v1192 = vrot.slane %v1182, %v1191
      %v1193 = vlaneseq
      %v1194 = vshrl.u32 %v1193, 7
      %v1195 = vsub.s32 0, %v1194
      %v1196 = vrot.slane %v1186, %v1195
      %v1197 = vmul.f32 %v1091, %v1192
      %v1198 = vmul.f32 %v1091, %v1196
      %v1199 = vmul.f32 %v1096, %v1192
      %v1200 = vmul.f32 %v1096, %v1196
      %v1201 = vlaneseq
      %v1202 = vshrl.u32 %v1201, 7
      %v1203 = vsub.s32 1, %v1202
      %v1204 = vrot.slane %v1177, %v1203
      %v1205 = vlaneseq
      %v1206 = vshrl.u32 %v1205, 7
      %v1207 = vsub.s32 5, %v1206
      %v1208 = vrot.slane %v1177, %v1207
      %v1211 = vlaneseq
      %v1212 = vshrl.u32 %v1211, 7
      %v1213 = vsub.s32 1, %v1212
      %v1214 = vrot.slane %v1204, %v1213
      %v1215 = vlaneseq
      %v1216 = vshrl.u32 %v1215, 7
      %v1217 = vsub.s32 1, %v1216
      %v1218 = vrot.slane %v1208, %v1217
      %v1219 = vmul.f32 %v1112, %v1214
      %v1220 = vmul.f32 %v1112, %v1218
      %v1221 = vmul.f32 %v1116, %v1214
      %v1222 = vmul.f32 %v1116, %v1218
      %v1223 = vadd.f32 %v1197, %v1219
      %v1224 = vadd.f32 %v1198, %v1220
      %v1225 = vadd.f32 %v1199, %v1221
      %v1226 = vadd.f32 %v1200, %v1222
      %v1227 = vlaneseq
      %v1228 = vshrl.u32 %v1227, 7
      %v1229 = vsub.s32 2, %v1228
      %v1230 = vrot.slane %v1177, %v1229
      %v1231 = vlaneseq
      %v1232 = vshrl.u32 %v1231, 7
      %v1233 = vsub.s32 6, %v1232
      %v1234 = vrot.slane %v1177, %v1233
      %v1237 = vlaneseq
      %v1238 = vshrl.u32 %v1237, 7
      %v1239 = vsub.s32 2, %v1238
      %v1240 = vrot.slane %v1230, %v1239
      %v1241 = vlaneseq
      %v1242 = vshrl.u32 %v1241, 7
      %v1243 = vsub.s32 2, %v1242
      %v1244 = vrot.slane %v1234, %v1243
      %v1245 = vmul.f32 %v1136, %v1240
      %v1246 = vmul.f32 %v1136, %v1244
      %v1247 = vmul.f32 %v1140, %v1240
      %v1248 = vmul.f32 %v1140, %v1244
      %v1249 = vadd.f32 %v1223, %v1245
      %v1250 = vadd.f32 %v1224, %v1246
      %v1251 = vadd.f32 %v1225, %v1247
      %v1252 = vadd.f32 %v1226, %v1248
      %v1253 = vadd.f32 %v1249, %v1161
      %v1254 = vadd.f32 %v1250, %v1161
      %v1255 = vadd.f32 %v1251, %v1166
      %v1256 = vadd.f32 %v1252, %v1166
      %v1257 = vmax.f32 %v1253, 0.0
      %v1258 = vmax.f32 %v1254, 0.0
      %v1259 = vmax.f32 %v1255, 0.0
      %v1260 = vmax.f32 %v1256, 0.0
      %v1262 = vcombine.high %v563, %v563
      %v1264 = vsub.f32 %v849, %v563
      %v1265 = vsub.f32 %v850, %v1262
      %v1266 = vsub.f32 %v1172, %v1257
      %v1267 = vsub.f32 %v1173, %v1258
      %v1268 = vsub.f32 %v1174, %v1259
      %v1269 = vsub.f32 %v1175, %v1260
      %v1270 = vld [vmem:[#allocation2] sm:$0x77]
      %v1271 = vmul.f32 %v1264, %v1264
      %v1272 = vmul.f32 %v1265, %v1265
      %v1275 = vcombine.low %v1271, %v1272
      %v1277 = vadd.f32 %v1270, %v1275
      %1278 = vst [vmem:[#allocation2] sm:$0x77] %v1277
      %v1279 = vld [vmem:[#allocation3] sm:$0xff]
      %v1280 = vld [vmem:[#allocation3 + $0x8] sm:$0xff]
      %v1281 = vld [vmem:[#allocation3 + $0x10] sm:$0xff]
      %v1282 = vld [vmem:[#allocation3 + $0x18] sm:$0xff]
      %v1283 = vmul.f32 %v1266, %v1266
      %v1284 = vmul.f32 %v1267, %v1267
      %v1285 = vmul.f32 %v1268, %v1268
      %v1286 = vmul.f32 %v1269, %v1269
      %v1287 = vadd.f32 %v1279, %v1283
      %v1288 = vadd.f32 %v1280, %v1284
      %v1289 = vadd.f32 %v1281, %v1285
      %v1290 = vadd.f32 %v1282, %v1286
      %1291 = vst [vmem:[#allocation3] sm:$0xff] %v1287
      %1292 = vst [vmem:[#allocation3 + $0x8] sm:$0xff] %v1288
      %1293 = vst [vmem:[#allocation3 + $0x10] sm:$0xff] %v1289
      %1294 = vst [vmem:[#allocation3 + $0x18] sm:$0xff] %v1290
      %v1295 = vld [vmem:[#allocation4] sm:$0xff]
      %v1296 = vld [vmem:[#allocation4 + $0x8] sm:$0xff]
      %v1297 = vadd.f32 %v1295, %v1080
      %v1298 = vadd.f32 %v1296, %v1082
      %1299 = vst [vmem:[#allocation4] sm:$0xff] %v1297
      %1300 = vst [vmem:[#allocation4 + $0x8] sm:$0xff] %v1298
      // Predicated region
      $region73: #{loss_g.1} parent=67 // pred_check
        %p1301 = pneg %p551
      $region74: #{loss_g.1} parent=67 // pred_check_branch
        %1303 = sbr.rel (%p1301) target = $region76
      $region75: #{loss_g.1} parent=67 // pred_region
        %v1304 = vld [vmem:[#allocation2] sm:$0x77]
        %v1306 = vcombine.high %v1304, %v1304
        %vm1308 = vcmask 1042432
        %v1309 = vsel %vm1308, %v1304, 0.0
        %v1310 = vsel %vm1308, %v1306, 0.0
        %v1311 = vadd.f32 %v1309, %v1310
        %1312 = vadd.xlane.f32.xlu0 %v1311
        %v1313 = vpop.xlane.xlu0 %1312
        %v1314 = vrot.slane %v1313, 4
        %v1315 = vadd.f32 %v1313, %v1314
        %v1316 = vrot.slane %v1315, 2
        %v1317 = vadd.f32 %v1315, %v1316
        %v1318 = vrot.slane %v1317, 1
        %v1319 = vadd.f32 %v1317, %v1318
        %s1320 = vtos %v1319
        %v1321 = vstv %s1320
        %1322 = vst [vmem:[%s542] sm:$0xff] %v1321
        %v1323 = vld [vmem:[#allocation3] sm:$0xff]
        %v1324 = vld [vmem:[#allocation3 + $0x8] sm:$0xff]
        %v1325 = vld [vmem:[#allocation3 + $0x10] sm:$0xff]
        %v1326 = vld [vmem:[#allocation3 + $0x18] sm:$0xff]
        %v1327 = vadd.f32 %v1323, %v1324
        %v1328 = vadd.f32 %v1327, %v1325
        %v1329 = vadd.f32 %v1328, %v1326
        %1330 = vadd.xlane.f32.xlu0 %v1329
        %v1331 = vpop.xlane.xlu0 %1330
        %v1332 = vrot.slane %v1331, 4
        %v1333 = vadd.f32 %v1331, %v1332
        %v1334 = vrot.slane %v1333, 2
        %v1335 = vadd.f32 %v1333, %v1334
        %v1336 = vrot.slane %v1335, 1
        %v1337 = vadd.f32 %v1335, %v1336
        %s1338 = vtos %v1337
        %v1339 = vstv %s1338
        %1340 = vst [vmem:[%s546] sm:$0xff] %v1339
        %v1341 = vld [vmem:[#allocation4] sm:$0xff]
        %v1342 = vld [vmem:[#allocation4 + $0x8] sm:$0xff]
        %v1343 = vadd.f32 %v1341, %v1342
        %1344 = vadd.xlane.f32.xlu0 %v1343
        %v1345 = vpop.xlane.xlu0 %1344
        %v1346 = vrot.slane %v1345, 4
        %v1347 = vadd.f32 %v1345, %v1346
        %v1348 = vrot.slane %v1347, 2
        %v1349 = vadd.f32 %v1347, %v1348
        %v1350 = vrot.slane %v1349, 1
        %v1351 = vadd.f32 %v1349, %v1350
        %s1352 = vtos %v1351
        %v1353 = vstv %s1352
        %1354 = vst [vmem:[%s550] sm:$0xff] %v1353
      $region76: #{loss_g.1} parent=67 // pred_fallthru
        _
      %p1355 = scmp.lt.s32.totalorder %s30, 1
      %s1356 = scalar_select %p1355, %s30, 1
      %s1357 = smul.addr %s1356, 8
      %s1358 = scalar_lea.vmem %s12, %s1357
      %p1359 = scmp.lt.s32.totalorder %s30, 1
      %s1360 = scalar_select %p1359, %s30, 1
      %s1361 = smul.addr %s1360, 8
      %s1362 = scalar_lea.vmem %s13, %s1361
      %p1363 = scmp.lt.s32.totalorder %s30, 1
      %s1364 = scalar_select %p1363, %s30, 1
      %s1365 = smul.addr %s1364, 8
      %s1366 = scalar_lea.vmem %s14, %s1365
      // Predicated region
      $region77: #{loss_g.1} parent=67 // pred_check
        %p1367 = pneg %p322
      $region78: #{loss_g.1} parent=67 // pred_check_branch
        %1369 = sbr.rel (%p1367) target = $region80
      $region79: #{loss_g.1} parent=67 // pred_region
        _
      $region80: #{loss_g.1} parent=67 // pred_fallthru
        _
      // Predicated region
      $region81: #{loss_g.1} parent=67 // pred_check
        %p1370 = pneg %p348
      $region82: #{loss_g.1} parent=67 // pred_check_branch
        %1372 = sbr.rel (%p1370) target = $region84
      $region83: #{loss_g.1} parent=67 // pred_region
        _
      $region84: #{loss_g.1} parent=67 // pred_fallthru
        _
      // Predicated region
      $region85: #{loss_g.1} parent=67 // pred_check
        %p1373 = pneg %p374
      $region86: #{loss_g.1} parent=67 // pred_check_branch
        %1375 = sbr.rel (%p1373) target = $region88
      $region87: #{loss_g.1} parent=67 // pred_region
        _
      $region88: #{loss_g.1} parent=67 // pred_fallthru
        _
    $region68: #{loss_g.1} parent=5 // pred_fallthru
      _
    %p1376 = scmp.le.s32.totalorder 2, %s21
    // Predicated region
    $region89: #{loss_g.1} parent=5 // pred_check
      %p1377 = pneg %p1376
    $region90: #{loss_g.1} parent=5 // pred_check_branch
      %1379 = sbr.rel (%p1377) target = $region92
    $region91: #{loss_g.1} parent=5 // pred_region
      %s1380 = ssub.s32 %s21, 2
      // Predicated region
      $region93: #{loss_g.1} parent=91 // pred_check
        %p1381 = pneg %p328
      $region94: #{loss_g.1} parent=91 // pred_check_branch
        %1383 = sbr.rel (%p1381) target = $region96
      $region95: #{loss_g.1} parent=91 // pred_region
        %p1384 = scmp.lt.s32.totalorder %s32, 1
        %s1385 = scalar_select %p1384, %s32, 1
        %s1386 = smul.addr %s1385, 8
        %s1387 = scalar_lea.vmem %s12, %s1386
      $region96: #{loss_g.1} parent=91 // pred_fallthru
        _
      // Predicated region
      $region97: #{loss_g.1} parent=91 // pred_check
        %p1388 = pneg %p354
      $region98: #{loss_g.1} parent=91 // pred_check_branch
        %1390 = sbr.rel (%p1388) target = $region100
      $region99: #{loss_g.1} parent=91 // pred_region
        %p1391 = scmp.lt.s32.totalorder %s32, 1
        %s1392 = scalar_select %p1391, %s32, 1
        %s1393 = smul.addr %s1392, 8
        %s1394 = scalar_lea.vmem %s13, %s1393
      $region100: #{loss_g.1} parent=91 // pred_fallthru
        _
      // Predicated region
      $region101: #{loss_g.1} parent=91 // pred_check
        %p1395 = pneg %p380
      $region102: #{loss_g.1} parent=91 // pred_check_branch
        %1397 = sbr.rel (%p1395) target = $region104
      $region103: #{loss_g.1} parent=91 // pred_region
        %p1398 = scmp.lt.s32.totalorder %s32, 1
        %s1399 = scalar_select %p1398, %s32, 1
        %s1400 = smul.addr %s1399, 8
        %s1401 = scalar_lea.vmem %s14, %s1400
      $region104: #{loss_g.1} parent=91 // pred_fallthru
        _
    $region92: #{loss_g.1} parent=5 // pred_fallthru
      _
  $region6: #{loss_g.1} parent=0 // loop_footer
    %s25 = sadd.s32 1, %s21
  $region7: #{loss_g.1} parent=0 // loop_footer_branch
    %20 = sbr.rel target = $region3
  $region8: #{loss_g.1} parent=0 // loop_exit
    _

</llo_original>
